<compile_context>
chip_gen: v7x
topology: tpu7x:2x2x1
jax: 0.10.0
libtpu: 0.0.40
codegen_flags: <defaults>
</compile_context>

<pallas_src>
import jax
import jax.numpy as jnp
from jax.experimental import pallas as pl
from jax.experimental.pallas import tpu as pltpu

# ---- net-spec hyperparameters (small, deterministic synthetic config) -------
B = 2       # batch_size
T = 8       # seq_len
D = 12      # state_dim (in_dim)
F = 64      # fc_hid_layers = [64], hid_layers_activation = 'relu'
H = 32      # rnn_hidden_size, cell_type = 'GRU', rnn_num_layers = 1
O = 6       # out_dim (integer -> single model_tail Linear, out_layer_activation=None)
H3 = 3 * H  # fused gate width (r | z | n), 96


def recurrent_net_kernel(
    x_ref,       # (T*B, D)  time-major, flattened
    w_fc_ref,    # (D, F)
    w_i_ref,     # (F, 3H)   [W_ir | W_iz | W_in]^T fused
    w_h_ref,     # (H, 3H)   [W_hr | W_hz | W_hn]^T fused
    w_tail_ref,  # (H, O)
    bias_ref,    # (4, 3H)   row0 = b_fc (first F lanes)
                 #           row1 = [b_ir+b_hr | b_iz+b_hz | b_in]
                 #           row2 = [0 | 0 | b_hn]
                 #           row3 = b_tail (first O lanes)
    out_ref,     # (B, O)
):
    # Unpack fused biases once, outside the recurrence.
    b_fc = bias_ref[0:1, :F]      # (1, F)
    b_i = bias_ref[1:2, :]        # (1, 3H)
    b_h = bias_ref[2:3, :]        # (1, 3H)
    b_tail = bias_ref[3:4, :O]    # (1, O)

    # (1) fc_model hoisted: one batched matmul + ReLU over all T*B rows.
    f = jnp.maximum(
        jnp.dot(x_ref[...], w_fc_ref[...], preferred_element_type=jnp.float32)
        + b_fc, 0.0)                                            # (T*B, F)

    # (2) all input-to-hidden gate projections in one matmul, bias pre-added.
    ih = (jnp.dot(f, w_i_ref[...], preferred_element_type=jnp.float32)
          + b_i)                                                # (T*B, 3H)

    w_h = w_h_ref[...]

    # (3) serial GRU recurrence: one fused (B,H)x(H,3H) matmul per step.
    h = jnp.zeros((B, H), jnp.float32)                          # h_0 = 0
    for t in range(T):                                          # compile-time unroll
        ih_t = ih[t * B:(t + 1) * B, :]                         # (B, 3H) static slice
        hh = jnp.dot(h, w_h, preferred_element_type=jnp.float32) + b_h   # (B, 3H)
        rz = jax.nn.sigmoid(ih_t[:, :2 * H] + hh[:, :2 * H])    # one EUP slab (B, 2H)
        r = rz[:, :H]
        z = rz[:, H:]
        n = jnp.tanh(ih_t[:, 2 * H:] + r * hh[:, 2 * H:])
        h = n + z * (h - n)                                     # == (1-z)*n + z*h

    # (4) model_tail: Linear(H -> O), out_layer_activation=None
    out_ref[...] = (
        jnp.dot(h, w_tail_ref[...], preferred_element_type=jnp.float32) + b_tail)


# ----------------------- host-side parameter fusion --------------------------
def fuse_params(params):
    (w_fc, b_fc,
     w_ir, w_iz, w_in, b_ir, b_iz, b_in,
     w_hr, w_hz, w_hn, b_hr, b_hz, b_hn,
     w_tail, b_tail) = params

    w_i = jnp.concatenate([w_ir, w_iz, w_in], axis=1)                   # (F, 3H)
    w_h = jnp.concatenate([w_hr, w_hz, w_hn], axis=1)                   # (H, 3H)
    b_i = jnp.concatenate([b_ir + b_hr, b_iz + b_hz, b_in], axis=1)     # (1, 3H)
    b_h = jnp.concatenate([jnp.zeros((1, 2 * H), jnp.float32), b_hn],
                          axis=1)                                       # (1, 3H)

    def pad_lanes(v):
        return jnp.pad(v, ((0, 0), (0, H3 - v.shape[1])))

    bias = jnp.concatenate([pad_lanes(b_fc), b_i, b_h, pad_lanes(b_tail)],
                           axis=0)                                      # (4, 3H)
    return w_fc, w_i, w_h, w_tail, bias


def recurrent_net_forward(x, params):
    w_fc, w_i, w_h, w_tail, bias = fuse_params(params)
    # Layout plumbing, wrapper-side: time-major + flatten so the kernel's
    # per-step access is a static leading-axis slice of a 2-D array.
    x_tm = jnp.transpose(x, (1, 0, 2)).reshape(T * B, D)
    args = (x_tm, w_fc, w_i, w_h, w_tail, bias)
    return pl.pallas_call(
        recurrent_net_kernel,
        out_shape=jax.ShapeDtypeStruct((B, O), jnp.float32),
        in_specs=[pl.BlockSpec(memory_space=pltpu.MemorySpace.VMEM)] * len(args),
        out_specs=pl.BlockSpec(memory_space=pltpu.MemorySpace.VMEM),
    )(*args)


# ----------------------------- parameter init --------------------------------
def xavier_uniform(key, shape):
    fan_in, fan_out = shape[0], shape[1]
    limit = jnp.sqrt(6.0 / (fan_in + fan_out))
    return jax.random.uniform(key, shape, jnp.float32, -limit, limit)


def make_params(key):
    ks = jax.random.split(key, 12)
    w_fc = xavier_uniform(ks[0], (D, F))
    b_fc = jnp.zeros((1, F), jnp.float32)
    # GRU weights (stored transposed, split per gate; PyTorch order r, z, n)
    w_ir = xavier_uniform(ks[1], (F, H))
    w_iz = xavier_uniform(ks[2], (F, H))
    w_in = xavier_uniform(ks[3], (F, H))
    w_hr = xavier_uniform(ks[4], (H, H))
    w_hz = xavier_uniform(ks[5], (H, H))
    w_hn = xavier_uniform(ks[6], (H, H))
    b_ir = 0.01 * jax.random.normal(ks[7], (1, H), jnp.float32)
    b_iz = 0.01 * jax.random.normal(ks[8], (1, H), jnp.float32)
    b_in = 0.01 * jax.random.normal(ks[9], (1, H), jnp.float32)
    b_hr = jnp.zeros((1, H), jnp.float32)
    b_hz = jnp.zeros((1, H), jnp.float32)
    b_hn = jnp.zeros((1, H), jnp.float32)
    w_tail = xavier_uniform(ks[10], (H, O))
    b_tail = jnp.zeros((1, O), jnp.float32)
    return (w_fc, b_fc,
            w_ir, w_iz, w_in, b_ir, b_iz, b_in,
            w_hr, w_hz, w_hn, b_hr, b_hz, b_hn,
            w_tail, b_tail)


# ------------------------- pure-JAX reference (_ref) -------------------------
def recurrent_net_ref(x, params):
    (w_fc, b_fc,
     w_ir, w_iz, w_in, b_ir, b_iz, b_in,
     w_hr, w_hz, w_hn, b_hr, b_hz, b_hn,
     w_tail, b_tail) = params
    xf = x.reshape(-1, D)
    ff = jnp.maximum(xf @ w_fc + b_fc, 0.0).reshape(B, T, F)
    h = jnp.zeros((B, H), jnp.float32)
    for t in range(T):
        ft = ff[:, t, :]
        r = jax.nn.sigmoid(ft @ w_ir + b_ir + h @ w_hr + b_hr)
        z = jax.nn.sigmoid(ft @ w_iz + b_iz + h @ w_hz + b_hz)
        n = jnp.tanh(ft @ w_in + b_in + r * (h @ w_hn + b_hn))
        h = (1.0 - z) * n + z * h
    return h @ w_tail + b_tail


if __name__ == "__main__":
    key = jax.random.PRNGKey(0)
    kx, kp = jax.random.split(key)
    x = jax.random.normal(kx, (B, T, D), jnp.float32)   # batch x seq_len x state_dim
    params = make_params(kp)

    out = recurrent_net_forward(x, params)
    out = jax.block_until_ready(out)

    ref = recurrent_net_ref(x, params)
    assert out.shape == (B, O)
    assert jnp.allclose(out, ref, rtol=1e-3, atol=1e-3), (out, ref)
    print("KERNEL_OK")
</pallas_src>

<mosaic_0001>
module attributes {stable_mosaic.version = 11 : i64} {
  func.func @recurrent_net_kernel(%arg0: memref<16x12xf32, #tpu.memory_space<vmem>>, %arg1: memref<12x64xf32, #tpu.memory_space<vmem>>, %arg2: memref<64x96xf32, #tpu.memory_space<vmem>>, %arg3: memref<32x96xf32, #tpu.memory_space<vmem>>, %arg4: memref<32x6xf32, #tpu.memory_space<vmem>>, %arg5: memref<4x96xf32, #tpu.memory_space<vmem>>, %arg6: memref<2x6xf32, #tpu.memory_space<vmem>>) attributes {dimension_semantics = [], scalar_prefetch = 0 : i64, scratch_operands = 0 : i64, tpu.core_type = #tpu.core_type<tc>} {
    %c0 = arith.constant 0 : index
    %c0_0 = arith.constant 0 : index
    %0 = vector.load %arg5[%c0, %c0_0] : memref<4x96xf32, #tpu.memory_space<vmem>>, vector<1x64xf32>
    %c1 = arith.constant 1 : index
    %c0_1 = arith.constant 0 : index
    %1 = vector.load %arg5[%c1, %c0_1] : memref<4x96xf32, #tpu.memory_space<vmem>>, vector<1x96xf32>
    %c2 = arith.constant 2 : index
    %c0_2 = arith.constant 0 : index
    %2 = vector.load %arg5[%c2, %c0_2] : memref<4x96xf32, #tpu.memory_space<vmem>>, vector<1x96xf32>
    %c3 = arith.constant 3 : index
    %c0_3 = arith.constant 0 : index
    %3 = vector.load %arg5[%c3, %c0_3] : memref<4x96xf32, #tpu.memory_space<vmem>>, vector<1x6xf32>
    %c0_4 = arith.constant 0 : index
    %c0_5 = arith.constant 0 : index
    %4 = vector.load %arg0[%c0_4, %c0_5] : memref<16x12xf32, #tpu.memory_space<vmem>>, vector<16x12xf32>
    %c0_6 = arith.constant 0 : index
    %c0_7 = arith.constant 0 : index
    %5 = vector.load %arg1[%c0_6, %c0_7] : memref<12x64xf32, #tpu.memory_space<vmem>>, vector<12x64xf32>
    %cst = arith.constant dense<0.000000e+00> : vector<16x64xf32>
    %6 = tpu.matmul %4, %5, %cst {dimension_numbers = #tpu.dot_dimension_numbers<[1], [0], [0], [1], [0, 0, 1, 1], [], []>} : vector<16x12xf32>, vector<12x64xf32>, vector<16x64xf32> -> vector<16x64xf32>
    %7 = vector.broadcast %0 : vector<1x64xf32> to vector<16x64xf32>
    %8 = arith.addf %6, %7 : vector<16x64xf32>
    %cst_8 = arith.constant 0.000000e+00 : f32
    %9 = vector.broadcast %cst_8 : f32 to vector<16x64xf32>
    %10 = arith.maximumf %8, %9 : vector<16x64xf32>
    %c0_9 = arith.constant 0 : index
    %c0_10 = arith.constant 0 : index
    %11 = vector.load %arg2[%c0_9, %c0_10] : memref<64x96xf32, #tpu.memory_space<vmem>>, vector<64x96xf32>
    %cst_11 = arith.constant dense<0.000000e+00> : vector<16x96xf32>
    %12 = tpu.matmul %10, %11, %cst_11 {dimension_numbers = #tpu.dot_dimension_numbers<[1], [0], [0], [1], [0, 0, 1, 1], [], []>} : vector<16x64xf32>, vector<64x96xf32>, vector<16x96xf32> -> vector<16x96xf32>
    %13 = vector.broadcast %1 : vector<1x96xf32> to vector<16x96xf32>
    %14 = arith.addf %12, %13 : vector<16x96xf32>
    %c0_12 = arith.constant 0 : index
    %c0_13 = arith.constant 0 : index
    %15 = vector.load %arg3[%c0_12, %c0_13] : memref<32x96xf32, #tpu.memory_space<vmem>>, vector<32x96xf32>
    %cst_14 = arith.constant 0.000000e+00 : f32
    %16 = vector.broadcast %cst_14 : f32 to vector<2x32xf32>
    %17 = vector.extract_strided_slice %14 {offsets = [0, 0], sizes = [2, 96], strides = [1, 1]} : vector<16x96xf32> to vector<2x96xf32>
    %cst_15 = arith.constant dense<0.000000e+00> : vector<2x96xf32>
    %18 = tpu.matmul %16, %15, %cst_15 {dimension_numbers = #tpu.dot_dimension_numbers<[1], [0], [0], [1], [0, 0, 1, 1], [], []>} : vector<2x32xf32>, vector<32x96xf32>, vector<2x96xf32> -> vector<2x96xf32>
    %19 = vector.broadcast %2 : vector<1x96xf32> to vector<2x96xf32>
    %20 = arith.addf %18, %19 : vector<2x96xf32>
    %21 = vector.extract_strided_slice %17 {offsets = [0, 0], sizes = [2, 64], strides = [1, 1]} : vector<2x96xf32> to vector<2x64xf32>
    %22 = vector.extract_strided_slice %20 {offsets = [0, 0], sizes = [2, 64], strides = [1, 1]} : vector<2x96xf32> to vector<2x64xf32>
    %23 = arith.addf %21, %22 : vector<2x64xf32>
    %24 = arith.negf %23 : vector<2x64xf32>
    %25 = math.exp %24 : vector<2x64xf32>
    %cst_16 = arith.constant 1.000000e+00 : f32
    %26 = vector.broadcast %cst_16 : f32 to vector<2x64xf32>
    %27 = arith.addf %26, %25 : vector<2x64xf32>
    %28 = arith.divf %26, %27 : vector<2x64xf32>
    %29 = vector.extract_strided_slice %28 {offsets = [0, 0], sizes = [2, 32], strides = [1, 1]} : vector<2x64xf32> to vector<2x32xf32>
    %30 = vector.extract_strided_slice %28 {offsets = [0, 32], sizes = [2, 32], strides = [1, 1]} : vector<2x64xf32> to vector<2x32xf32>
    %31 = vector.extract_strided_slice %17 {offsets = [0, 64], sizes = [2, 32], strides = [1, 1]} : vector<2x96xf32> to vector<2x32xf32>
    %32 = vector.extract_strided_slice %20 {offsets = [0, 64], sizes = [2, 32], strides = [1, 1]} : vector<2x96xf32> to vector<2x32xf32>
    %33 = arith.mulf %29, %32 : vector<2x32xf32>
    %34 = arith.addf %31, %33 : vector<2x32xf32>
    %35 = math.tanh %34 : vector<2x32xf32>
    %36 = arith.subf %16, %35 : vector<2x32xf32>
    %37 = arith.mulf %30, %36 : vector<2x32xf32>
    %38 = arith.addf %35, %37 : vector<2x32xf32>
    %39 = vector.extract_strided_slice %14 {offsets = [2, 0], sizes = [2, 96], strides = [1, 1]} : vector<16x96xf32> to vector<2x96xf32>
    %cst_17 = arith.constant dense<0.000000e+00> : vector<2x96xf32>
    %40 = tpu.matmul %38, %15, %cst_17 {dimension_numbers = #tpu.dot_dimension_numbers<[1], [0], [0], [1], [0, 0, 1, 1], [], []>} : vector<2x32xf32>, vector<32x96xf32>, vector<2x96xf32> -> vector<2x96xf32>
    %41 = vector.broadcast %2 : vector<1x96xf32> to vector<2x96xf32>
    %42 = arith.addf %40, %41 : vector<2x96xf32>
    %43 = vector.extract_strided_slice %39 {offsets = [0, 0], sizes = [2, 64], strides = [1, 1]} : vector<2x96xf32> to vector<2x64xf32>
    %44 = vector.extract_strided_slice %42 {offsets = [0, 0], sizes = [2, 64], strides = [1, 1]} : vector<2x96xf32> to vector<2x64xf32>
    %45 = arith.addf %43, %44 : vector<2x64xf32>
    %46 = arith.negf %45 : vector<2x64xf32>
    %47 = math.exp %46 : vector<2x64xf32>
    %cst_18 = arith.constant 1.000000e+00 : f32
    %48 = vector.broadcast %cst_18 : f32 to vector<2x64xf32>
    %49 = arith.addf %48, %47 : vector<2x64xf32>
    %50 = arith.divf %48, %49 : vector<2x64xf32>
    %51 = vector.extract_strided_slice %50 {offsets = [0, 0], sizes = [2, 32], strides = [1, 1]} : vector<2x64xf32> to vector<2x32xf32>
    %52 = vector.extract_strided_slice %50 {offsets = [0, 32], sizes = [2, 32], strides = [1, 1]} : vector<2x64xf32> to vector<2x32xf32>
    %53 = vector.extract_strided_slice %39 {offsets = [0, 64], sizes = [2, 32], strides = [1, 1]} : vector<2x96xf32> to vector<2x32xf32>
    %54 = vector.extract_strided_slice %42 {offsets = [0, 64], sizes = [2, 32], strides = [1, 1]} : vector<2x96xf32> to vector<2x32xf32>
    %55 = arith.mulf %51, %54 : vector<2x32xf32>
    %56 = arith.addf %53, %55 : vector<2x32xf32>
    %57 = math.tanh %56 : vector<2x32xf32>
    %58 = arith.subf %38, %57 : vector<2x32xf32>
    %59 = arith.mulf %52, %58 : vector<2x32xf32>
    %60 = arith.addf %57, %59 : vector<2x32xf32>
    %61 = vector.extract_strided_slice %14 {offsets = [4, 0], sizes = [2, 96], strides = [1, 1]} : vector<16x96xf32> to vector<2x96xf32>
    %cst_19 = arith.constant dense<0.000000e+00> : vector<2x96xf32>
    %62 = tpu.matmul %60, %15, %cst_19 {dimension_numbers = #tpu.dot_dimension_numbers<[1], [0], [0], [1], [0, 0, 1, 1], [], []>} : vector<2x32xf32>, vector<32x96xf32>, vector<2x96xf32> -> vector<2x96xf32>
    %63 = vector.broadcast %2 : vector<1x96xf32> to vector<2x96xf32>
    %64 = arith.addf %62, %63 : vector<2x96xf32>
    %65 = vector.extract_strided_slice %61 {offsets = [0, 0], sizes = [2, 64], strides = [1, 1]} : vector<2x96xf32> to vector<2x64xf32>
    %66 = vector.extract_strided_slice %64 {offsets = [0, 0], sizes = [2, 64], strides = [1, 1]} : vector<2x96xf32> to vector<2x64xf32>
    %67 = arith.addf %65, %66 : vector<2x64xf32>
    %68 = arith.negf %67 : vector<2x64xf32>
    %69 = math.exp %68 : vector<2x64xf32>
    %cst_20 = arith.constant 1.000000e+00 : f32
    %70 = vector.broadcast %cst_20 : f32 to vector<2x64xf32>
    %71 = arith.addf %70, %69 : vector<2x64xf32>
    %72 = arith.divf %70, %71 : vector<2x64xf32>
    %73 = vector.extract_strided_slice %72 {offsets = [0, 0], sizes = [2, 32], strides = [1, 1]} : vector<2x64xf32> to vector<2x32xf32>
    %74 = vector.extract_strided_slice %72 {offsets = [0, 32], sizes = [2, 32], strides = [1, 1]} : vector<2x64xf32> to vector<2x32xf32>
    %75 = vector.extract_strided_slice %61 {offsets = [0, 64], sizes = [2, 32], strides = [1, 1]} : vector<2x96xf32> to vector<2x32xf32>
    %76 = vector.extract_strided_slice %64 {offsets = [0, 64], sizes = [2, 32], strides = [1, 1]} : vector<2x96xf32> to vector<2x32xf32>
    %77 = arith.mulf %73, %76 : vector<2x32xf32>
    %78 = arith.addf %75, %77 : vector<2x32xf32>
    %79 = math.tanh %78 : vector<2x32xf32>
    %80 = arith.subf %60, %79 : vector<2x32xf32>
    %81 = arith.mulf %74, %80 : vector<2x32xf32>
    %82 = arith.addf %79, %81 : vector<2x32xf32>
    %83 = vector.extract_strided_slice %14 {offsets = [6, 0], sizes = [2, 96], strides = [1, 1]} : vector<16x96xf32> to vector<2x96xf32>
    %cst_21 = arith.constant dense<0.000000e+00> : vector<2x96xf32>
    %84 = tpu.matmul %82, %15, %cst_21 {dimension_numbers = #tpu.dot_dimension_numbers<[1], [0], [0], [1], [0, 0, 1, 1], [], []>} : vector<2x32xf32>, vector<32x96xf32>, vector<2x96xf32> -> vector<2x96xf32>
    %85 = vector.broadcast %2 : vector<1x96xf32> to vector<2x96xf32>
    %86 = arith.addf %84, %85 : vector<2x96xf32>
    %87 = vector.extract_strided_slice %83 {offsets = [0, 0], sizes = [2, 64], strides = [1, 1]} : vector<2x96xf32> to vector<2x64xf32>
    %88 = vector.extract_strided_slice %86 {offsets = [0, 0], sizes = [2, 64], strides = [1, 1]} : vector<2x96xf32> to vector<2x64xf32>
    %89 = arith.addf %87, %88 : vector<2x64xf32>
    %90 = arith.negf %89 : vector<2x64xf32>
    %91 = math.exp %90 : vector<2x64xf32>
    %cst_22 = arith.constant 1.000000e+00 : f32
    %92 = vector.broadcast %cst_22 : f32 to vector<2x64xf32>
    %93 = arith.addf %92, %91 : vector<2x64xf32>
    %94 = arith.divf %92, %93 : vector<2x64xf32>
    %95 = vector.extract_strided_slice %94 {offsets = [0, 0], sizes = [2, 32], strides = [1, 1]} : vector<2x64xf32> to vector<2x32xf32>
    %96 = vector.extract_strided_slice %94 {offsets = [0, 32], sizes = [2, 32], strides = [1, 1]} : vector<2x64xf32> to vector<2x32xf32>
    %97 = vector.extract_strided_slice %83 {offsets = [0, 64], sizes = [2, 32], strides = [1, 1]} : vector<2x96xf32> to vector<2x32xf32>
    %98 = vector.extract_strided_slice %86 {offsets = [0, 64], sizes = [2, 32], strides = [1, 1]} : vector<2x96xf32> to vector<2x32xf32>
    %99 = arith.mulf %95, %98 : vector<2x32xf32>
    %100 = arith.addf %97, %99 : vector<2x32xf32>
    %101 = math.tanh %100 : vector<2x32xf32>
    %102 = arith.subf %82, %101 : vector<2x32xf32>
    %103 = arith.mulf %96, %102 : vector<2x32xf32>
    %104 = arith.addf %101, %103 : vector<2x32xf32>
    %105 = vector.extract_strided_slice %14 {offsets = [8, 0], sizes = [2, 96], strides = [1, 1]} : vector<16x96xf32> to vector<2x96xf32>
    %cst_23 = arith.constant dense<0.000000e+00> : vector<2x96xf32>
    %106 = tpu.matmul %104, %15, %cst_23 {dimension_numbers = #tpu.dot_dimension_numbers<[1], [0], [0], [1], [0, 0, 1, 1], [], []>} : vector<2x32xf32>, vector<32x96xf32>, vector<2x96xf32> -> vector<2x96xf32>
    %107 = vector.broadcast %2 : vector<1x96xf32> to vector<2x96xf32>
    %108 = arith.addf %106, %107 : vector<2x96xf32>
    %109 = vector.extract_strided_slice %105 {offsets = [0, 0], sizes = [2, 64], strides = [1, 1]} : vector<2x96xf32> to vector<2x64xf32>
    %110 = vector.extract_strided_slice %108 {offsets = [0, 0], sizes = [2, 64], strides = [1, 1]} : vector<2x96xf32> to vector<2x64xf32>
    %111 = arith.addf %109, %110 : vector<2x64xf32>
    %112 = arith.negf %111 : vector<2x64xf32>
    %113 = math.exp %112 : vector<2x64xf32>
    %cst_24 = arith.constant 1.000000e+00 : f32
    %114 = vector.broadcast %cst_24 : f32 to vector<2x64xf32>
    %115 = arith.addf %114, %113 : vector<2x64xf32>
    %116 = arith.divf %114, %115 : vector<2x64xf32>
    %117 = vector.extract_strided_slice %116 {offsets = [0, 0], sizes = [2, 32], strides = [1, 1]} : vector<2x64xf32> to vector<2x32xf32>
    %118 = vector.extract_strided_slice %116 {offsets = [0, 32], sizes = [2, 32], strides = [1, 1]} : vector<2x64xf32> to vector<2x32xf32>
    %119 = vector.extract_strided_slice %105 {offsets = [0, 64], sizes = [2, 32], strides = [1, 1]} : vector<2x96xf32> to vector<2x32xf32>
    %120 = vector.extract_strided_slice %108 {offsets = [0, 64], sizes = [2, 32], strides = [1, 1]} : vector<2x96xf32> to vector<2x32xf32>
    %121 = arith.mulf %117, %120 : vector<2x32xf32>
    %122 = arith.addf %119, %121 : vector<2x32xf32>
    %123 = math.tanh %122 : vector<2x32xf32>
    %124 = arith.subf %104, %123 : vector<2x32xf32>
    %125 = arith.mulf %118, %124 : vector<2x32xf32>
    %126 = arith.addf %123, %125 : vector<2x32xf32>
    %127 = vector.extract_strided_slice %14 {offsets = [10, 0], sizes = [2, 96], strides = [1, 1]} : vector<16x96xf32> to vector<2x96xf32>
    %cst_25 = arith.constant dense<0.000000e+00> : vector<2x96xf32>
    %128 = tpu.matmul %126, %15, %cst_25 {dimension_numbers = #tpu.dot_dimension_numbers<[1], [0], [0], [1], [0, 0, 1, 1], [], []>} : vector<2x32xf32>, vector<32x96xf32>, vector<2x96xf32> -> vector<2x96xf32>
    %129 = vector.broadcast %2 : vector<1x96xf32> to vector<2x96xf32>
    %130 = arith.addf %128, %129 : vector<2x96xf32>
    %131 = vector.extract_strided_slice %127 {offsets = [0, 0], sizes = [2, 64], strides = [1, 1]} : vector<2x96xf32> to vector<2x64xf32>
    %132 = vector.extract_strided_slice %130 {offsets = [0, 0], sizes = [2, 64], strides = [1, 1]} : vector<2x96xf32> to vector<2x64xf32>
    %133 = arith.addf %131, %132 : vector<2x64xf32>
    %134 = arith.negf %133 : vector<2x64xf32>
    %135 = math.exp %134 : vector<2x64xf32>
    %cst_26 = arith.constant 1.000000e+00 : f32
    %136 = vector.broadcast %cst_26 : f32 to vector<2x64xf32>
    %137 = arith.addf %136, %135 : vector<2x64xf32>
    %138 = arith.divf %136, %137 : vector<2x64xf32>
    %139 = vector.extract_strided_slice %138 {offsets = [0, 0], sizes = [2, 32], strides = [1, 1]} : vector<2x64xf32> to vector<2x32xf32>
    %140 = vector.extract_strided_slice %138 {offsets = [0, 32], sizes = [2, 32], strides = [1, 1]} : vector<2x64xf32> to vector<2x32xf32>
    %141 = vector.extract_strided_slice %127 {offsets = [0, 64], sizes = [2, 32], strides = [1, 1]} : vector<2x96xf32> to vector<2x32xf32>
    %142 = vector.extract_strided_slice %130 {offsets = [0, 64], sizes = [2, 32], strides = [1, 1]} : vector<2x96xf32> to vector<2x32xf32>
    %143 = arith.mulf %139, %142 : vector<2x32xf32>
    %144 = arith.addf %141, %143 : vector<2x32xf32>
    %145 = math.tanh %144 : vector<2x32xf32>
    %146 = arith.subf %126, %145 : vector<2x32xf32>
    %147 = arith.mulf %140, %146 : vector<2x32xf32>
    %148 = arith.addf %145, %147 : vector<2x32xf32>
    %149 = vector.extract_strided_slice %14 {offsets = [12, 0], sizes = [2, 96], strides = [1, 1]} : vector<16x96xf32> to vector<2x96xf32>
    %cst_27 = arith.constant dense<0.000000e+00> : vector<2x96xf32>
    %150 = tpu.matmul %148, %15, %cst_27 {dimension_numbers = #tpu.dot_dimension_numbers<[1], [0], [0], [1], [0, 0, 1, 1], [], []>} : vector<2x32xf32>, vector<32x96xf32>, vector<2x96xf32> -> vector<2x96xf32>
    %151 = vector.broadcast %2 : vector<1x96xf32> to vector<2x96xf32>
    %152 = arith.addf %150, %151 : vector<2x96xf32>
    %153 = vector.extract_strided_slice %149 {offsets = [0, 0], sizes = [2, 64], strides = [1, 1]} : vector<2x96xf32> to vector<2x64xf32>
    %154 = vector.extract_strided_slice %152 {offsets = [0, 0], sizes = [2, 64], strides = [1, 1]} : vector<2x96xf32> to vector<2x64xf32>
    %155 = arith.addf %153, %154 : vector<2x64xf32>
    %156 = arith.negf %155 : vector<2x64xf32>
    %157 = math.exp %156 : vector<2x64xf32>
    %cst_28 = arith.constant 1.000000e+00 : f32
    %158 = vector.broadcast %cst_28 : f32 to vector<2x64xf32>
    %159 = arith.addf %158, %157 : vector<2x64xf32>
    %160 = arith.divf %158, %159 : vector<2x64xf32>
    %161 = vector.extract_strided_slice %160 {offsets = [0, 0], sizes = [2, 32], strides = [1, 1]} : vector<2x64xf32> to vector<2x32xf32>
    %162 = vector.extract_strided_slice %160 {offsets = [0, 32], sizes = [2, 32], strides = [1, 1]} : vector<2x64xf32> to vector<2x32xf32>
    %163 = vector.extract_strided_slice %149 {offsets = [0, 64], sizes = [2, 32], strides = [1, 1]} : vector<2x96xf32> to vector<2x32xf32>
    %164 = vector.extract_strided_slice %152 {offsets = [0, 64], sizes = [2, 32], strides = [1, 1]} : vector<2x96xf32> to vector<2x32xf32>
    %165 = arith.mulf %161, %164 : vector<2x32xf32>
    %166 = arith.addf %163, %165 : vector<2x32xf32>
    %167 = math.tanh %166 : vector<2x32xf32>
    %168 = arith.subf %148, %167 : vector<2x32xf32>
    %169 = arith.mulf %162, %168 : vector<2x32xf32>
    %170 = arith.addf %167, %169 : vector<2x32xf32>
    %171 = vector.extract_strided_slice %14 {offsets = [14, 0], sizes = [2, 96], strides = [1, 1]} : vector<16x96xf32> to vector<2x96xf32>
    %cst_29 = arith.constant dense<0.000000e+00> : vector<2x96xf32>
    %172 = tpu.matmul %170, %15, %cst_29 {dimension_numbers = #tpu.dot_dimension_numbers<[1], [0], [0], [1], [0, 0, 1, 1], [], []>} : vector<2x32xf32>, vector<32x96xf32>, vector<2x96xf32> -> vector<2x96xf32>
    %173 = vector.broadcast %2 : vector<1x96xf32> to vector<2x96xf32>
    %174 = arith.addf %172, %173 : vector<2x96xf32>
    %175 = vector.extract_strided_slice %171 {offsets = [0, 0], sizes = [2, 64], strides = [1, 1]} : vector<2x96xf32> to vector<2x64xf32>
    %176 = vector.extract_strided_slice %174 {offsets = [0, 0], sizes = [2, 64], strides = [1, 1]} : vector<2x96xf32> to vector<2x64xf32>
    %177 = arith.addf %175, %176 : vector<2x64xf32>
    %178 = arith.negf %177 : vector<2x64xf32>
    %179 = math.exp %178 : vector<2x64xf32>
    %cst_30 = arith.constant 1.000000e+00 : f32
    %180 = vector.broadcast %cst_30 : f32 to vector<2x64xf32>
    %181 = arith.addf %180, %179 : vector<2x64xf32>
    %182 = arith.divf %180, %181 : vector<2x64xf32>
    %183 = vector.extract_strided_slice %182 {offsets = [0, 0], sizes = [2, 32], strides = [1, 1]} : vector<2x64xf32> to vector<2x32xf32>
    %184 = vector.extract_strided_slice %182 {offsets = [0, 32], sizes = [2, 32], strides = [1, 1]} : vector<2x64xf32> to vector<2x32xf32>
    %185 = vector.extract_strided_slice %171 {offsets = [0, 64], sizes = [2, 32], strides = [1, 1]} : vector<2x96xf32> to vector<2x32xf32>
    %186 = vector.extract_strided_slice %174 {offsets = [0, 64], sizes = [2, 32], strides = [1, 1]} : vector<2x96xf32> to vector<2x32xf32>
    %187 = arith.mulf %183, %186 : vector<2x32xf32>
    %188 = arith.addf %185, %187 : vector<2x32xf32>
    %189 = math.tanh %188 : vector<2x32xf32>
    %190 = arith.subf %170, %189 : vector<2x32xf32>
    %191 = arith.mulf %184, %190 : vector<2x32xf32>
    %192 = arith.addf %189, %191 : vector<2x32xf32>
    %c0_31 = arith.constant 0 : index
    %c0_32 = arith.constant 0 : index
    %193 = vector.load %arg4[%c0_31, %c0_32] : memref<32x6xf32, #tpu.memory_space<vmem>>, vector<32x6xf32>
    %cst_33 = arith.constant dense<0.000000e+00> : vector<2x6xf32>
    %194 = tpu.matmul %192, %193, %cst_33 {dimension_numbers = #tpu.dot_dimension_numbers<[1], [0], [0], [1], [0, 0, 1, 1], [], []>} : vector<2x32xf32>, vector<32x6xf32>, vector<2x6xf32> -> vector<2x6xf32>
    %195 = vector.broadcast %3 : vector<1x6xf32> to vector<2x6xf32>
    %196 = arith.addf %194, %195 : vector<2x6xf32>
    %c0_34 = arith.constant 0 : index
    %c0_35 = arith.constant 0 : index
    %197 = vector.load %arg6[%c0_34, %c0_35] : memref<2x6xf32, #tpu.memory_space<vmem>>, vector<2x6xf32>
    tpu.vector_store %arg6[%c0_34, %c0_35], %196 {strides = array<i32>} : memref<2x6xf32, #tpu.memory_space<vmem>>, vector<2x6xf32>,
    return
  }
}

</mosaic_0001>

<llo_original>
// kernel: tpu_custom_call.1
$region0: #{tpu_custom_call.1}
  #allocation0 [shape = 'u32[]', space=smem, size = 0x4, offset = 0x4, fixed_abs, tag = 'smem constant byte address 0x4 - core index']
  #allocation1 [shape = 'u32[144,128]{1,0:T(1,128)}', space=vmem, size = 0x12000, scoped, tag = 'internal scratch']
  %s0 = inlined_call_operand.vmem [shape: f32[16,12], index: 0, kind: input, shape index: {}]
  %s1 = inlined_call_operand.hbm [shape: f32[12,64], index: 1, kind: input, shape index: {}]
  %s2 = inlined_call_operand.hbm [shape: f32[64,96], index: 2, kind: input, shape index: {}]
  %s3 = inlined_call_operand.vmem [shape: f32[32,96], index: 3, kind: input, shape index: {}]
  %s4 = inlined_call_operand.vmem [shape: f32[32,6], index: 4, kind: input, shape index: {}]
  %s5 = inlined_call_operand.vmem [shape: f32[4,96], index: 5, kind: input, shape index: {}]
  %s6 = inlined_call_operand.hbm [shape: f32[2,6], index: 6, kind: output, shape index: {}]
  %s7 = sld [smem:[#allocation0]]
  $region42: #{tpu_custom_call.1} parent=0
    _
  %s9 = ssub.s32 1, %s7
  %s10 = scalar_select 0, %s9, %s7
  $region1: #{tpu_custom_call.1} parent=0
    #allocation2 [shape = 'u8[8192]{0}', space=vmem, size = 0x2000, scoped, tag = 'input window, operand 1, single buffered']
    #allocation3 [shape = 's32[1]{0}', space=sflag, size = 0x4, scoped, tag = 'scoped memory for tpu_custom_call.1']
    #allocation4 [shape = 's32[1]{0}', space=sflag, size = 0x4, scoped, tag = 'scoped memory for tpu_custom_call.1']
    #allocation5 [shape = 'u8[32768]{0}', space=vmem, size = 0x8000, scoped, tag = 'input window, operand 2, single buffered']
    #allocation6 [shape = 's32[1]{0}', space=sflag, size = 0x4, scoped, tag = 'scoped memory for tpu_custom_call.1']
    #allocation7 [shape = 'u8[1024]{0}', space=vmem, size = 0x400, scoped, tag = 'output window, operand 0, single buffered']
    %11 = vsyncpa [#allocation3], 0
    %12 = vsyncpa [#allocation6], 0
    %13 = vsyncpa [#allocation4], 0
    // Predicated region
    $region2: #{tpu_custom_call.1} parent=1 // pred_check
      _
    $region3: #{tpu_custom_call.1} parent=1 // pred_check_branch
      %15 = sbr.rel (0) target = $region5
    $region4: #{tpu_custom_call.1} parent=1 // pred_region
      _
    $region5: #{tpu_custom_call.1} parent=1 // pred_fallthru
      _
    // Predicated region
    $region6: #{tpu_custom_call.1} parent=1 // pred_check
      _
    $region7: #{tpu_custom_call.1} parent=1 // pred_check_branch
      %17 = sbr.rel (0) target = $region9
    $region8: #{tpu_custom_call.1} parent=1 // pred_region
      %s19 = ssub.s32 256, 256
      %20 = vsyncadd [#allocation3], %s19
      %s21 = sshll.u32 [#allocation2], 4
      %s22 = int_to_ptr.vmem [resolvable:$true] %s21
      %27 = dma.hbm_to_vmem [thread:$0]  %s1, 256, %s22, [#allocation3], 128, 128, 8
    $region9: #{tpu_custom_call.1} parent=1 // pred_fallthru
      _
    // Predicated region
    $region10: #{tpu_custom_call.1} parent=1 // pred_check
      _
    $region11: #{tpu_custom_call.1} parent=1 // pred_check_branch
      %29 = sbr.rel (0) target = $region13
    $region12: #{tpu_custom_call.1} parent=1 // pred_region
      %s31 = ssub.s32 1024, 1024
      %32 = vsyncadd [#allocation6], %s31
      %s33 = sshll.u32 [#allocation5], 4
      %s34 = int_to_ptr.vmem [resolvable:$true] %s33
      %39 = dma.hbm_to_vmem [thread:$0]  %s2, 1024, %s34, [#allocation6], 128, 128, 8
    $region13: #{tpu_custom_call.1} parent=1 // pred_fallthru
      _
    // Predicated region
    $region14: #{tpu_custom_call.1} parent=1 // pred_check
      _
    $region15: #{tpu_custom_call.1} parent=1 // pred_check_branch
      %41 = sbr.rel (0) target = $region17
    $region16: #{tpu_custom_call.1} parent=1 // pred_region
      _
    $region17: #{tpu_custom_call.1} parent=1 // pred_fallthru
      _
    // Predicated region
    $region18: #{tpu_custom_call.1} parent=1 // pred_check
      _
    $region19: #{tpu_custom_call.1} parent=1 // pred_check_branch
      %43 = sbr.rel (0) target = $region21
    $region20: #{tpu_custom_call.1} parent=1 // pred_region
      _
    $region21: #{tpu_custom_call.1} parent=1 // pred_fallthru
      _
    // Predicated region
    $region22: #{tpu_custom_call.1} parent=1 // pred_check
      _
    $region23: #{tpu_custom_call.1} parent=1 // pred_check_branch
      %45 = sbr.rel (0) target = $region25
    $region24: #{tpu_custom_call.1} parent=1 // pred_region
      _
    $region25: #{tpu_custom_call.1} parent=1 // pred_fallthru
      _
    // Predicated region
    $region26: #{tpu_custom_call.1} parent=1 // pred_check
      _
    $region27: #{tpu_custom_call.1} parent=1 // pred_check_branch
      %47 = sbr.rel (0) target = $region29
    $region28: #{tpu_custom_call.1} parent=1 // pred_region
      %48 = dma.done [#allocation3], 256
    $region29: #{tpu_custom_call.1} parent=1 // pred_fallthru
      _
    // Predicated region
    $region30: #{tpu_custom_call.1} parent=1 // pred_check
      _
    $region31: #{tpu_custom_call.1} parent=1 // pred_check_branch
      %50 = sbr.rel (0) target = $region33
    $region32: #{tpu_custom_call.1} parent=1 // pred_region
      %51 = dma.done [#allocation6], 1024
    $region33: #{tpu_custom_call.1} parent=1 // pred_fallthru
      _
    %v52 = vld [vmem:[%s5] sm:$0x1]
    %v53 = vld [vmem:[%s5 + $0x1] sm:$0x1]
    %v54 = vld [vmem:[%s5 + $0x2] sm:$0x1]
    %v55 = vld [vmem:[%s5 + $0x3] sm:$0x1]
    %v56 = vld [vmem:[%s0] sm:$0xff]
    %v57 = vld [vmem:[%s0 + $0x8] sm:$0xff]
    %v58 = vld [vmem:[#allocation2] sm:$0xff]
    %v59 = vld [vmem:[#allocation2 + $0x8] sm:$0xf]
    %v60 = vlaneseq
    %v61 = vshrl.u32 %v60, 7
    %v62 = vsub.s32 0, %v61
    %v63 = vrot.slane %v52, %v62
    %vm64 = vcmask 97280
    %v66 = vsel %vm64, %v56, 0
    %v69 = vsel %vm64, %v57, 0
    %vm71 = vcmask 1043456
    %v73 = vsel %vm71, %v59, 0
    %75 = vmatprep.subr.mxu0 0.0
    %76 = vmatpush1.msra.mxu0 %v58
    %77 = vmatprep.subr.mxu0 0.0
    %78 = vmatpush1.msra.mxu0 %v73
    %79 = vmatprep.subr.mxu0 0.0
    %80 = vmatpush1.msra.mxu0 0.0
    %81 = vmatprep.subr.mxu0 0.0
    %82 = vmatpush1.msra.mxu0 0.0
    %83 = vmatprep.subr.mxu0 0.0
    %84 = vmatpush1.msra.mxu0 0.0
    %85 = vmatprep.subr.mxu0 0.0
    %86 = vmatpush1.msra.mxu0 0.0
    %87 = vmatprep.subr.mxu0 0.0
    %88 = vmatpush1.msra.mxu0 0.0
    %89 = vmatprep.subr.mxu0 0.0
    %90 = vmatpush1.msra.mxu0 0.0
    %91 = vmatprep.subr.mxu0 0.0
    %92 = vmatpush1.msra.mxu0 0.0
    %93 = vmatprep.subr.mxu0 0.0
    %94 = vmatpush1.msra.mxu0 0.0
    %95 = vmatprep.subr.mxu0 0.0
    %96 = vmatpush1.msra.mxu0 0.0
    %97 = vmatprep.subr.mxu0 0.0
    %98 = vmatpush1.msra.mxu0 0.0
    %99 = vmatprep.subr.mxu0 0.0
    %100 = vmatpush1.msra.mxu0 0.0
    %101 = vmatprep.subr.mxu0 0.0
    %102 = vmatpush1.msra.mxu0 0.0
    %103 = vmatprep.subr.mxu0 0.0
    %104 = vmatpush1.msra.mxu0 0.0
    %105 = vmatprep.subr.mxu0 0.0
    %106 = vmatpush1.msra.mxu0 0.0
    %107 = vmatprep.subr.mxu0 0.0
    %108 = vmatpush1.msra.mxu0 0.0
    %109 = vmatprep.subr.mxu0 0.0
    %110 = vmatpush1.msra.mxu0 0.0
    %111 = vmatprep.subr.mxu0 0.0
    %112 = vmatpush1.msra.mxu0 0.0
    %113 = vmatprep.subr.mxu0 0.0
    %114 = vmatpush1.msra.mxu0 0.0
    %115 = vmatprep.subr.mxu0 0.0
    %116 = vmatpush1.msra.mxu0 0.0
    %117 = vmatprep.subr.mxu0 0.0
    %118 = vmatpush1.msra.mxu0 0.0
    %119 = vmatprep.subr.mxu0 0.0
    %120 = vmatpush1.msra.mxu0 0.0
    %121 = vmatprep.subr.mxu0 0.0
    %122 = vmatpush1.msra.mxu0 0.0
    %123 = vmatprep.subr.mxu0 0.0
    %124 = vmatpush1.msra.mxu0 0.0
    %125 = vmatprep.subr.mxu0 0.0
    %126 = vmatpush1.msra.mxu0 0.0
    %127 = vmatprep.subr.mxu0 0.0
    %128 = vmatpush1.msra.mxu0 0.0
    %129 = vmatprep.subr.mxu0 0.0
    %130 = vmatpush1.msra.mxu0 0.0
    %131 = vmatprep.subr.mxu0 0.0
    %132 = vmatpush1.msra.mxu0 0.0
    %133 = vmatprep.subr.mxu0 0.0
    %134 = vmatpush1.msra.mxu0 0.0
    %135 = vmatprep.subr.mxu0 0.0
    %136 = vmatpush1.msra.mxu0 0.0
    %137 = vmatprep.subr.mxu0 0.0
    %138 = vmatpush1.msra.mxu0 0.0
    %139 = vmatprep.mubr.f32.mxu0 0.0
    %140 = vmatmul.mubr.f32.gmra.mrb[0].mxu0 %v66
    %v141 = vpop.f32.mrb[0].mxu0
    %v142 = vadd.f32 %v63, %v141
    %v143 = vpop.f32.mrb[0].mxu0
    %144 = vmatprep.mubr.f32.mxu0 0.0
    %145 = vmatmul.mubr.f32.gmra.mrb[0].mxu0 %v69
    %v146 = vpop.f32.mrb[0].mxu0
    %v147 = vadd.f32 %v63, %v146
    %v148 = vpop.f32.mrb[0].mxu0
    %149 = vdwg.mxu0
    %v150 = vmax.f32 %v142, 0.0
    %v151 = vmax.f32 %v147, 0.0
    %v152 = vld [vmem:[#allocation5] sm:$0xff]
    %v153 = vld [vmem:[#allocation5 + $0x8] sm:$0xff]
    %v154 = vld [vmem:[#allocation5 + $0x10] sm:$0xff]
    %v155 = vld [vmem:[#allocation5 + $0x18] sm:$0xff]
    %v156 = vld [vmem:[#allocation5 + $0x20] sm:$0xff]
    %v157 = vld [vmem:[#allocation5 + $0x28] sm:$0xff]
    %v158 = vld [vmem:[#allocation5 + $0x30] sm:$0xff]
    %v159 = vld [vmem:[#allocation5 + $0x38] sm:$0xff]
    %v160 = vlaneseq
    %v161 = vshrl.u32 %v160, 7
    %v162 = vsub.s32 0, %v161
    %v163 = vrot.slane %v53, %v162
    %vm164 = vcmask 523264
    %v166 = vsel %vm164, %v150, 0
    %v169 = vsel %vm164, %v151, 0
    %171 = vmatprep.subr.mxu0 0.0
    %172 = vmatpush1.msra.mxu0 %v152
    %173 = vmatprep.subr.mxu0 0.0
    %174 = vmatpush1.msra.mxu0 %v153
    %175 = vmatprep.subr.mxu0 0.0
    %176 = vmatpush1.msra.mxu0 %v154
    %177 = vmatprep.subr.mxu0 0.0
    %178 = vmatpush1.msra.mxu0 %v155
    %179 = vmatprep.subr.mxu0 0.0
    %180 = vmatpush1.msra.mxu0 %v156
    %181 = vmatprep.subr.mxu0 0.0
    %182 = vmatpush1.msra.mxu0 %v157
    %183 = vmatprep.subr.mxu0 0.0
    %184 = vmatpush1.msra.mxu0 %v158
    %185 = vmatprep.subr.mxu0 0.0
    %186 = vmatpush1.msra.mxu0 %v159
    %187 = vmatprep.subr.mxu0 0.0
    %188 = vmatpush1.msra.mxu0 0.0
    %189 = vmatprep.subr.mxu0 0.0
    %190 = vmatpush1.msra.mxu0 0.0
    %191 = vmatprep.subr.mxu0 0.0
    %192 = vmatpush1.msra.mxu0 0.0
    %193 = vmatprep.subr.mxu0 0.0
    %194 = vmatpush1.msra.mxu0 0.0
    %195 = vmatprep.subr.mxu0 0.0
    %196 = vmatpush1.msra.mxu0 0.0
    %197 = vmatprep.subr.mxu0 0.0
    %198 = vmatpush1.msra.mxu0 0.0
    %199 = vmatprep.subr.mxu0 0.0
    %200 = vmatpush1.msra.mxu0 0.0
    %201 = vmatprep.subr.mxu0 0.0
    %202 = vmatpush1.msra.mxu0 0.0
    %203 = vmatprep.subr.mxu0 0.0
    %204 = vmatpush1.msra.mxu0 0.0
    %205 = vmatprep.subr.mxu0 0.0
    %206 = vmatpush1.msra.mxu0 0.0
    %207 = vmatprep.subr.mxu0 0.0
    %208 = vmatpush1.msra.mxu0 0.0
    %209 = vmatprep.subr.mxu0 0.0
    %210 = vmatpush1.msra.mxu0 0.0
    %211 = vmatprep.subr.mxu0 0.0
    %212 = vmatpush1.msra.mxu0 0.0
    %213 = vmatprep.subr.mxu0 0.0
    %214 = vmatpush1.msra.mxu0 0.0
    %215 = vmatprep.subr.mxu0 0.0
    %216 = vmatpush1.msra.mxu0 0.0
    %217 = vmatprep.subr.mxu0 0.0
    %218 = vmatpush1.msra.mxu0 0.0
    %219 = vmatprep.subr.mxu0 0.0
    %220 = vmatpush1.msra.mxu0 0.0
    %221 = vmatprep.subr.mxu0 0.0
    %222 = vmatpush1.msra.mxu0 0.0
    %223 = vmatprep.subr.mxu0 0.0
    %224 = vmatpush1.msra.mxu0 0.0
    %225 = vmatprep.subr.mxu0 0.0
    %226 = vmatpush1.msra.mxu0 0.0
    %227 = vmatprep.subr.mxu0 0.0
    %228 = vmatpush1.msra.mxu0 0.0
    %229 = vmatprep.subr.mxu0 0.0
    %230 = vmatpush1.msra.mxu0 0.0
    %231 = vmatprep.subr.mxu0 0.0
    %232 = vmatpush1.msra.mxu0 0.0
    %233 = vmatprep.subr.mxu0 0.0
    %234 = vmatpush1.msra.mxu0 0.0
    %235 = vmatprep.mubr.f32.mxu0 0.0
    %236 = vmatmul.mubr.f32.gmra.mrb[0].mxu0 %v166
    %v237 = vpop.f32.mrb[0].mxu0
    %v238 = vadd.f32 %v163, %v237
    %v239 = vpop.f32.mrb[0].mxu0
    %240 = vmatprep.mubr.f32.mxu0 0.0
    %241 = vmatmul.mubr.f32.gmra.mrb[0].mxu0 %v169
    %v242 = vpop.f32.mrb[0].mxu0
    %v243 = vadd.f32 %v163, %v242
    %v244 = vpop.f32.mrb[0].mxu0
    %245 = vdwg.mxu0
    %v246 = vld [vmem:[%s3] sm:$0xff]
    %v247 = vld [vmem:[%s3 + $0x8] sm:$0xff]
    %v248 = vld [vmem:[%s3 + $0x10] sm:$0xff]
    %v249 = vld [vmem:[%s3 + $0x18] sm:$0xff]
    %v250 = vlaneseq
    %v251 = vshrl.u32 %v250, 7
    %v252 = vsub.s32 0, %v251
    %v253 = vrot.slane %v54, %v252
    %vm254 = vcmask 261120
    %v256 = vsel %vm254, 0.0, 0
    %258 = vmatprep.subr.mxu0 0.0
    %259 = vmatpush1.msra.mxu0 %v246
    %260 = vmatprep.subr.mxu0 0.0
    %261 = vmatpush1.msra.mxu0 %v247
    %262 = vmatprep.subr.mxu0 0.0
    %263 = vmatpush1.msra.mxu0 %v248
    %264 = vmatprep.subr.mxu0 0.0
    %265 = vmatpush1.msra.mxu0 %v249
    %266 = vmatprep.subr.mxu0 0.0
    %267 = vmatpush1.msra.mxu0 0.0
    %268 = vmatprep.subr.mxu0 0.0
    %269 = vmatpush1.msra.mxu0 0.0
    %270 = vmatprep.subr.mxu0 0.0
    %271 = vmatpush1.msra.mxu0 0.0
    %272 = vmatprep.subr.mxu0 0.0
    %273 = vmatpush1.msra.mxu0 0.0
    %274 = vmatprep.subr.mxu0 0.0
    %275 = vmatpush1.msra.mxu0 0.0
    %276 = vmatprep.subr.mxu0 0.0
    %277 = vmatpush1.msra.mxu0 0.0
    %278 = vmatprep.subr.mxu0 0.0
    %279 = vmatpush1.msra.mxu0 0.0
    %280 = vmatprep.subr.mxu0 0.0
    %281 = vmatpush1.msra.mxu0 0.0
    %282 = vmatprep.subr.mxu0 0.0
    %283 = vmatpush1.msra.mxu0 0.0
    %284 = vmatprep.subr.mxu0 0.0
    %285 = vmatpush1.msra.mxu0 0.0
    %286 = vmatprep.subr.mxu0 0.0
    %287 = vmatpush1.msra.mxu0 0.0
    %288 = vmatprep.subr.mxu0 0.0
    %289 = vmatpush1.msra.mxu0 0.0
    %290 = vmatprep.subr.mxu0 0.0
    %291 = vmatpush1.msra.mxu0 0.0
    %292 = vmatprep.subr.mxu0 0.0
    %293 = vmatpush1.msra.mxu0 0.0
    %294 = vmatprep.subr.mxu0 0.0
    %295 = vmatpush1.msra.mxu0 0.0
    %296 = vmatprep.subr.mxu0 0.0
    %297 = vmatpush1.msra.mxu0 0.0
    %298 = vmatprep.subr.mxu0 0.0
    %299 = vmatpush1.msra.mxu0 0.0
    %300 = vmatprep.subr.mxu0 0.0
    %301 = vmatpush1.msra.mxu0 0.0
    %302 = vmatprep.subr.mxu0 0.0
    %303 = vmatpush1.msra.mxu0 0.0
    %304 = vmatprep.subr.mxu0 0.0
    %305 = vmatpush1.msra.mxu0 0.0
    %306 = vmatprep.subr.mxu0 0.0
    %307 = vmatpush1.msra.mxu0 0.0
    %308 = vmatprep.subr.mxu0 0.0
    %309 = vmatpush1.msra.mxu0 0.0
    %310 = vmatprep.subr.mxu0 0.0
    %311 = vmatpush1.msra.mxu0 0.0
    %312 = vmatprep.subr.mxu0 0.0
    %313 = vmatpush1.msra.mxu0 0.0
    %314 = vmatprep.subr.mxu0 0.0
    %315 = vmatpush1.msra.mxu0 0.0
    %316 = vmatprep.subr.mxu0 0.0
    %317 = vmatpush1.msra.mxu0 0.0
    %318 = vmatprep.subr.mxu0 0.0
    %319 = vmatpush1.msra.mxu0 0.0
    %320 = vmatprep.subr.mxu0 0.0
    %321 = vmatpush1.msra.mxu0 0.0
    %322 = vmatprep.mubr.f32.mxu0 0.0
    %323 = vmatmul.mubr.f32.gmra.mrb[0].mxu0 %v256
    %v324 = vpop.f32.mrb[0].mxu0
    %v325 = vadd.f32 %v253, %v324
    %v326 = vpop.f32.mrb[0].mxu0
    %327 = vdwg.mxu0
    %v328 = vadd.f32 %v238, %v325
    %v329 = vxor.u32 %v328, 2147483648
    %v330 = vmul.f32 %v329, 1.442695
    %v331 = vpow.pop %v330
    %v332 = vadd.f32 %v331, 1.0
    %v333 = vrcp.pop %v332
    %v334 = vmul.f32 1.0, %v333
    %336 = vrot.lane.b32.xlu0 %v325, 64
    %v337 = vpop.permute.xlu0 %336
    %v339 = vmul.f32 %v334, %v337
    %341 = vrot.lane.b32.xlu0 %v339, 64
    %v342 = vpop.permute.xlu0 %341
    %v344 = vadd.f32 %v238, %v342
    %v345 = vtanh.pop %v344
    %v346 = vsub.f32 0.0, %v345
    %348 = vrot.lane.b32.xlu0 %v346, 96
    %v349 = vpop.permute.xlu0 %348
    %v351 = vmul.f32 %v334, %v349
    %353 = vrot.lane.b32.xlu0 %v351, 32
    %v354 = vpop.permute.xlu0 %353
    %v356 = vadd.f32 %v345, %v354
    %358 = vrot.lane.b32.xlu0 %v356, 64
    %v359 = vpop.permute.xlu0 %358
    %v360 = vsel %vm254, %v359, 0
    %362 = vmatprep.subr.mxu0 0.0
    %363 = vmatpush1.msra.mxu0 %v246
    %364 = vmatprep.subr.mxu0 0.0
    %365 = vmatpush1.msra.mxu0 %v247
    %366 = vmatprep.subr.mxu0 0.0
    %367 = vmatpush1.msra.mxu0 %v248
    %368 = vmatprep.subr.mxu0 0.0
    %369 = vmatpush1.msra.mxu0 %v249
    %370 = vmatprep.subr.mxu0 0.0
    %371 = vmatpush1.msra.mxu0 0.0
    %372 = vmatprep.subr.mxu0 0.0
    %373 = vmatpush1.msra.mxu0 0.0
    %374 = vmatprep.subr.mxu0 0.0
    %375 = vmatpush1.msra.mxu0 0.0
    %376 = vmatprep.subr.mxu0 0.0
    %377 = vmatpush1.msra.mxu0 0.0
    %378 = vmatprep.subr.mxu0 0.0
    %379 = vmatpush1.msra.mxu0 0.0
    %380 = vmatprep.subr.mxu0 0.0
    %381 = vmatpush1.msra.mxu0 0.0
    %382 = vmatprep.subr.mxu0 0.0
    %383 = vmatpush1.msra.mxu0 0.0
    %384 = vmatprep.subr.mxu0 0.0
    %385 = vmatpush1.msra.mxu0 0.0
    %386 = vmatprep.subr.mxu0 0.0
    %387 = vmatpush1.msra.mxu0 0.0
    %388 = vmatprep.subr.mxu0 0.0
    %389 = vmatpush1.msra.mxu0 0.0
    %390 = vmatprep.subr.mxu0 0.0
    %391 = vmatpush1.msra.mxu0 0.0
    %392 = vmatprep.subr.mxu0 0.0
    %393 = vmatpush1.msra.mxu0 0.0
    %394 = vmatprep.subr.mxu0 0.0
    %395 = vmatpush1.msra.mxu0 0.0
    %396 = vmatprep.subr.mxu0 0.0
    %397 = vmatpush1.msra.mxu0 0.0
    %398 = vmatprep.subr.mxu0 0.0
    %399 = vmatpush1.msra.mxu0 0.0
    %400 = vmatprep.subr.mxu0 0.0
    %401 = vmatpush1.msra.mxu0 0.0
    %402 = vmatprep.subr.mxu0 0.0
    %403 = vmatpush1.msra.mxu0 0.0
    %404 = vmatprep.subr.mxu0 0.0
    %405 = vmatpush1.msra.mxu0 0.0
    %406 = vmatprep.subr.mxu0 0.0
    %407 = vmatpush1.msra.mxu0 0.0
    %408 = vmatprep.subr.mxu0 0.0
    %409 = vmatpush1.msra.mxu0 0.0
    %410 = vmatprep.subr.mxu0 0.0
    %411 = vmatpush1.msra.mxu0 0.0
    %412 = vmatprep.subr.mxu0 0.0
    %413 = vmatpush1.msra.mxu0 0.0
    %414 = vmatprep.subr.mxu0 0.0
    %415 = vmatpush1.msra.mxu0 0.0
    %416 = vmatprep.subr.mxu0 0.0
    %417 = vmatpush1.msra.mxu0 0.0
    %418 = vmatprep.subr.mxu0 0.0
    %419 = vmatpush1.msra.mxu0 0.0
    %420 = vmatprep.subr.mxu0 0.0
    %421 = vmatpush1.msra.mxu0 0.0
    %422 = vmatprep.subr.mxu0 0.0
    %423 = vmatpush1.msra.mxu0 0.0
    %424 = vmatprep.subr.mxu0 0.0
    %425 = vmatpush1.msra.mxu0 0.0
    %426 = vmatprep.mubr.f32.mxu0 0.0
    %427 = vmatmul.mubr.f32.gmra.mrb[0].mxu0 %v360
    %v428 = vpop.f32.mrb[0].mxu0
    %v429 = vadd.f32 %v253, %v428
    %v430 = vpop.f32.mrb[0].mxu0
    %431 = vdwg.mxu0
    %v433 = vrot.slane %v429, 6
    %v435 = vadd.f32 %v238, %v433
    %v436 = vxor.u32 %v435, 2147483648
    %v437 = vmul.f32 %v436, 1.442695
    %v438 = vpow.pop %v437
    %v439 = vadd.f32 %v438, 1.0
    %v440 = vrcp.pop %v439
    %v441 = vmul.f32 1.0, %v440
    %442 = vrot.lane.b32.xlu0 %v433, 64
    %v443 = vpop.permute.xlu0 %442
    %v445 = vmul.f32 %v441, %v443
    %447 = vrot.lane.b32.xlu0 %v445, 64
    %v448 = vpop.permute.xlu0 %447
    %v450 = vadd.f32 %v238, %v448
    %v451 = vtanh.pop %v450
    %v453 = vrot.slane %v451, 2
    %v455 = vsub.f32 %v356, %v453
    %v457 = vrot.slane %v455, 6
    %458 = vrot.lane.b32.xlu0 %v457, 96
    %v459 = vpop.permute.xlu0 %458
    %v461 = vmul.f32 %v441, %v459
    %463 = vrot.lane.b32.xlu0 %v461, 32
    %v464 = vpop.permute.xlu0 %463
    %v466 = vadd.f32 %v451, %v464
    %v468 = vrot.slane %v466, 2
    %469 = vrot.lane.b32.xlu0 %v468, 64
    %v470 = vpop.permute.xlu0 %469
    %v471 = vsel %vm254, %v470, 0
    %473 = vmatprep.subr.mxu0 0.0
    %474 = vmatpush1.msra.mxu0 %v246
    %475 = vmatprep.subr.mxu0 0.0
    %476 = vmatpush1.msra.mxu0 %v247
    %477 = vmatprep.subr.mxu0 0.0
    %478 = vmatpush1.msra.mxu0 %v248
    %479 = vmatprep.subr.mxu0 0.0
    %480 = vmatpush1.msra.mxu0 %v249
    %481 = vmatprep.subr.mxu0 0.0
    %482 = vmatpush1.msra.mxu0 0.0
    %483 = vmatprep.subr.mxu0 0.0
    %484 = vmatpush1.msra.mxu0 0.0
    %485 = vmatprep.subr.mxu0 0.0
    %486 = vmatpush1.msra.mxu0 0.0
    %487 = vmatprep.subr.mxu0 0.0
    %488 = vmatpush1.msra.mxu0 0.0
    %489 = vmatprep.subr.mxu0 0.0
    %490 = vmatpush1.msra.mxu0 0.0
    %491 = vmatprep.subr.mxu0 0.0
    %492 = vmatpush1.msra.mxu0 0.0
    %493 = vmatprep.subr.mxu0 0.0
    %494 = vmatpush1.msra.mxu0 0.0
    %495 = vmatprep.subr.mxu0 0.0
    %496 = vmatpush1.msra.mxu0 0.0
    %497 = vmatprep.subr.mxu0 0.0
    %498 = vmatpush1.msra.mxu0 0.0
    %499 = vmatprep.subr.mxu0 0.0
    %500 = vmatpush1.msra.mxu0 0.0
    %501 = vmatprep.subr.mxu0 0.0
    %502 = vmatpush1.msra.mxu0 0.0
    %503 = vmatprep.subr.mxu0 0.0
    %504 = vmatpush1.msra.mxu0 0.0
    %505 = vmatprep.subr.mxu0 0.0
    %506 = vmatpush1.msra.mxu0 0.0
    %507 = vmatprep.subr.mxu0 0.0
    %508 = vmatpush1.msra.mxu0 0.0
    %509 = vmatprep.subr.mxu0 0.0
    %510 = vmatpush1.msra.mxu0 0.0
    %511 = vmatprep.subr.mxu0 0.0
    %512 = vmatpush1.msra.mxu0 0.0
    %513 = vmatprep.subr.mxu0 0.0
    %514 = vmatpush1.msra.mxu0 0.0
    %515 = vmatprep.subr.mxu0 0.0
    %516 = vmatpush1.msra.mxu0 0.0
    %517 = vmatprep.subr.mxu0 0.0
    %518 = vmatpush1.msra.mxu0 0.0
    %519 = vmatprep.subr.mxu0 0.0
    %520 = vmatpush1.msra.mxu0 0.0
    %521 = vmatprep.subr.mxu0 0.0
    %522 = vmatpush1.msra.mxu0 0.0
    %523 = vmatprep.subr.mxu0 0.0
    %524 = vmatpush1.msra.mxu0 0.0
    %525 = vmatprep.subr.mxu0 0.0
    %526 = vmatpush1.msra.mxu0 0.0
    %527 = vmatprep.subr.mxu0 0.0
    %528 = vmatpush1.msra.mxu0 0.0
    %529 = vmatprep.subr.mxu0 0.0
    %530 = vmatpush1.msra.mxu0 0.0
    %531 = vmatprep.subr.mxu0 0.0
    %532 = vmatpush1.msra.mxu0 0.0
    %533 = vmatprep.subr.mxu0 0.0
    %534 = vmatpush1.msra.mxu0 0.0
    %535 = vmatprep.subr.mxu0 0.0
    %536 = vmatpush1.msra.mxu0 0.0
    %537 = vmatprep.mubr.f32.mxu0 0.0
    %538 = vmatmul.mubr.f32.gmra.mrb[0].mxu0 %v471
    %v539 = vpop.f32.mrb[0].mxu0
    %v540 = vadd.f32 %v253, %v539
    %v541 = vpop.f32.mrb[0].mxu0
    %542 = vdwg.mxu0
    %v544 = vrot.slane %v540, 4
    %v546 = vadd.f32 %v238, %v544
    %v547 = vxor.u32 %v546, 2147483648
    %v548 = vmul.f32 %v547, 1.442695
    %v549 = vpow.pop %v548
    %v550 = vadd.f32 %v549, 1.0
    %v551 = vrcp.pop %v550
    %v552 = vmul.f32 1.0, %v551
    %553 = vrot.lane.b32.xlu0 %v544, 64
    %v554 = vpop.permute.xlu0 %553
    %v556 = vmul.f32 %v552, %v554
    %558 = vrot.lane.b32.xlu0 %v556, 64
    %v559 = vpop.permute.xlu0 %558
    %v561 = vadd.f32 %v238, %v559
    %v562 = vtanh.pop %v561
    %v564 = vrot.slane %v562, 2
    %v566 = vsub.f32 %v466, %v564
    %v568 = vrot.slane %v566, 6
    %569 = vrot.lane.b32.xlu0 %v568, 96
    %v570 = vpop.permute.xlu0 %569
    %v572 = vmul.f32 %v552, %v570
    %574 = vrot.lane.b32.xlu0 %v572, 32
    %v575 = vpop.permute.xlu0 %574
    %v577 = vadd.f32 %v562, %v575
    %v579 = vrot.slane %v577, 4
    %580 = vrot.lane.b32.xlu0 %v579, 64
    %v581 = vpop.permute.xlu0 %580
    %v582 = vsel %vm254, %v581, 0
    %584 = vmatprep.subr.mxu0 0.0
    %585 = vmatpush1.msra.mxu0 %v246
    %586 = vmatprep.subr.mxu0 0.0
    %587 = vmatpush1.msra.mxu0 %v247
    %588 = vmatprep.subr.mxu0 0.0
    %589 = vmatpush1.msra.mxu0 %v248
    %590 = vmatprep.subr.mxu0 0.0
    %591 = vmatpush1.msra.mxu0 %v249
    %592 = vmatprep.subr.mxu0 0.0
    %593 = vmatpush1.msra.mxu0 0.0
    %594 = vmatprep.subr.mxu0 0.0
    %595 = vmatpush1.msra.mxu0 0.0
    %596 = vmatprep.subr.mxu0 0.0
    %597 = vmatpush1.msra.mxu0 0.0
    %598 = vmatprep.subr.mxu0 0.0
    %599 = vmatpush1.msra.mxu0 0.0
    %600 = vmatprep.subr.mxu0 0.0
    %601 = vmatpush1.msra.mxu0 0.0
    %602 = vmatprep.subr.mxu0 0.0
    %603 = vmatpush1.msra.mxu0 0.0
    %604 = vmatprep.subr.mxu0 0.0
    %605 = vmatpush1.msra.mxu0 0.0
    %606 = vmatprep.subr.mxu0 0.0
    %607 = vmatpush1.msra.mxu0 0.0
    %608 = vmatprep.subr.mxu0 0.0
    %609 = vmatpush1.msra.mxu0 0.0
    %610 = vmatprep.subr.mxu0 0.0
    %611 = vmatpush1.msra.mxu0 0.0
    %612 = vmatprep.subr.mxu0 0.0
    %613 = vmatpush1.msra.mxu0 0.0
    %614 = vmatprep.subr.mxu0 0.0
    %615 = vmatpush1.msra.mxu0 0.0
    %616 = vmatprep.subr.mxu0 0.0
    %617 = vmatpush1.msra.mxu0 0.0
    %618 = vmatprep.subr.mxu0 0.0
    %619 = vmatpush1.msra.mxu0 0.0
    %620 = vmatprep.subr.mxu0 0.0
    %621 = vmatpush1.msra.mxu0 0.0
    %622 = vmatprep.subr.mxu0 0.0
    %623 = vmatpush1.msra.mxu0 0.0
    %624 = vmatprep.subr.mxu0 0.0
    %625 = vmatpush1.msra.mxu0 0.0
    %626 = vmatprep.subr.mxu0 0.0
    %627 = vmatpush1.msra.mxu0 0.0
    %628 = vmatprep.subr.mxu0 0.0
    %629 = vmatpush1.msra.mxu0 0.0
    %630 = vmatprep.subr.mxu0 0.0
    %631 = vmatpush1.msra.mxu0 0.0
    %632 = vmatprep.subr.mxu0 0.0
    %633 = vmatpush1.msra.mxu0 0.0
    %634 = vmatprep.subr.mxu0 0.0
    %635 = vmatpush1.msra.mxu0 0.0
    %636 = vmatprep.subr.mxu0 0.0
    %637 = vmatpush1.msra.mxu0 0.0
    %638 = vmatprep.subr.mxu0 0.0
    %639 = vmatpush1.msra.mxu0 0.0
    %640 = vmatprep.subr.mxu0 0.0
    %641 = vmatpush1.msra.mxu0 0.0
    %642 = vmatprep.subr.mxu0 0.0
    %643 = vmatpush1.msra.mxu0 0.0
    %644 = vmatprep.subr.mxu0 0.0
    %645 = vmatpush1.msra.mxu0 0.0
    %646 = vmatprep.subr.mxu0 0.0
    %647 = vmatpush1.msra.mxu0 0.0
    %648 = vmatprep.mubr.f32.mxu0 0.0
    %649 = vmatmul.mubr.f32.gmra.mrb[0].mxu0 %v582
    %v650 = vpop.f32.mrb[0].mxu0
    %v651 = vadd.f32 %v253, %v650
    %v652 = vpop.f32.mrb[0].mxu0
    %653 = vdwg.mxu0
    %v655 = vrot.slane %v651, 2
    %v657 = vadd.f32 %v238, %v655
    %v658 = vxor.u32 %v657, 2147483648
    %v659 = vmul.f32 %v658, 1.442695
    %v660 = vpow.pop %v659
    %v661 = vadd.f32 %v660, 1.0
    %v662 = vrcp.pop %v661
    %v663 = vmul.f32 1.0, %v662
    %664 = vrot.lane.b32.xlu0 %v655, 64
    %v665 = vpop.permute.xlu0 %664
    %v667 = vmul.f32 %v663, %v665
    %669 = vrot.lane.b32.xlu0 %v667, 64
    %v670 = vpop.permute.xlu0 %669
    %v672 = vadd.f32 %v238, %v670
    %v673 = vtanh.pop %v672
    %v675 = vrot.slane %v673, 2
    %v677 = vsub.f32 %v577, %v675
    %v679 = vrot.slane %v677, 6
    %680 = vrot.lane.b32.xlu0 %v679, 96
    %v681 = vpop.permute.xlu0 %680
    %v683 = vmul.f32 %v663, %v681
    %685 = vrot.lane.b32.xlu0 %v683, 32
    %v686 = vpop.permute.xlu0 %685
    %v688 = vadd.f32 %v673, %v686
    %v690 = vrot.slane %v688, 6
    %691 = vrot.lane.b32.xlu0 %v690, 64
    %v692 = vpop.permute.xlu0 %691
    %v693 = vsel %vm254, %v692, 0
    %695 = vmatprep.subr.mxu0 0.0
    %696 = vmatpush1.msra.mxu0 %v246
    %697 = vmatprep.subr.mxu0 0.0
    %698 = vmatpush1.msra.mxu0 %v247
    %699 = vmatprep.subr.mxu0 0.0
    %700 = vmatpush1.msra.mxu0 %v248
    %701 = vmatprep.subr.mxu0 0.0
    %702 = vmatpush1.msra.mxu0 %v249
    %703 = vmatprep.subr.mxu0 0.0
    %704 = vmatpush1.msra.mxu0 0.0
    %705 = vmatprep.subr.mxu0 0.0
    %706 = vmatpush1.msra.mxu0 0.0
    %707 = vmatprep.subr.mxu0 0.0
    %708 = vmatpush1.msra.mxu0 0.0
    %709 = vmatprep.subr.mxu0 0.0
    %710 = vmatpush1.msra.mxu0 0.0
    %711 = vmatprep.subr.mxu0 0.0
    %712 = vmatpush1.msra.mxu0 0.0
    %713 = vmatprep.subr.mxu0 0.0
    %714 = vmatpush1.msra.mxu0 0.0
    %715 = vmatprep.subr.mxu0 0.0
    %716 = vmatpush1.msra.mxu0 0.0
    %717 = vmatprep.subr.mxu0 0.0
    %718 = vmatpush1.msra.mxu0 0.0
    %719 = vmatprep.subr.mxu0 0.0
    %720 = vmatpush1.msra.mxu0 0.0
    %721 = vmatprep.subr.mxu0 0.0
    %722 = vmatpush1.msra.mxu0 0.0
    %723 = vmatprep.subr.mxu0 0.0
    %724 = vmatpush1.msra.mxu0 0.0
    %725 = vmatprep.subr.mxu0 0.0
    %726 = vmatpush1.msra.mxu0 0.0
    %727 = vmatprep.subr.mxu0 0.0
    %728 = vmatpush1.msra.mxu0 0.0
    %729 = vmatprep.subr.mxu0 0.0
    %730 = vmatpush1.msra.mxu0 0.0
    %731 = vmatprep.subr.mxu0 0.0
    %732 = vmatpush1.msra.mxu0 0.0
    %733 = vmatprep.subr.mxu0 0.0
    %734 = vmatpush1.msra.mxu0 0.0
    %735 = vmatprep.subr.mxu0 0.0
    %736 = vmatpush1.msra.mxu0 0.0
    %737 = vmatprep.subr.mxu0 0.0
    %738 = vmatpush1.msra.mxu0 0.0
    %739 = vmatprep.subr.mxu0 0.0
    %740 = vmatpush1.msra.mxu0 0.0
    %741 = vmatprep.subr.mxu0 0.0
    %742 = vmatpush1.msra.mxu0 0.0
    %743 = vmatprep.subr.mxu0 0.0
    %744 = vmatpush1.msra.mxu0 0.0
    %745 = vmatprep.subr.mxu0 0.0
    %746 = vmatpush1.msra.mxu0 0.0
    %747 = vmatprep.subr.mxu0 0.0
    %748 = vmatpush1.msra.mxu0 0.0
    %749 = vmatprep.subr.mxu0 0.0
    %750 = vmatpush1.msra.mxu0 0.0
    %751 = vmatprep.subr.mxu0 0.0
    %752 = vmatpush1.msra.mxu0 0.0
    %753 = vmatprep.subr.mxu0 0.0
    %754 = vmatpush1.msra.mxu0 0.0
    %755 = vmatprep.subr.mxu0 0.0
    %756 = vmatpush1.msra.mxu0 0.0
    %757 = vmatprep.subr.mxu0 0.0
    %758 = vmatpush1.msra.mxu0 0.0
    %759 = vmatprep.mubr.f32.mxu0 0.0
    %760 = vmatmul.mubr.f32.gmra.mrb[0].mxu0 %v693
    %v761 = vpop.f32.mrb[0].mxu0
    %v762 = vadd.f32 %v253, %v761
    %v763 = vpop.f32.mrb[0].mxu0
    %764 = vdwg.mxu0
    %v765 = vadd.f32 %v243, %v762
    %v766 = vxor.u32 %v765, 2147483648
    %v767 = vmul.f32 %v766, 1.442695
    %v768 = vpow.pop %v767
    %v769 = vadd.f32 %v768, 1.0
    %v770 = vrcp.pop %v769
    %v771 = vmul.f32 1.0, %v770
    %773 = vrot.lane.b32.xlu0 %v762, 64
    %v774 = vpop.permute.xlu0 %773
    %v776 = vmul.f32 %v771, %v774
    %778 = vrot.lane.b32.xlu0 %v776, 64
    %v779 = vpop.permute.xlu0 %778
    %v781 = vadd.f32 %v243, %v779
    %v782 = vtanh.pop %v781
    %v784 = vrot.slane %v782, 2
    %v786 = vsub.f32 %v688, %v784
    %v788 = vrot.slane %v786, 6
    %789 = vrot.lane.b32.xlu0 %v788, 96
    %v790 = vpop.permute.xlu0 %789
    %v792 = vmul.f32 %v771, %v790
    %794 = vrot.lane.b32.xlu0 %v792, 32
    %v795 = vpop.permute.xlu0 %794
    %v797 = vadd.f32 %v782, %v795
    %799 = vrot.lane.b32.xlu0 %v797, 64
    %v800 = vpop.permute.xlu0 %799
    %v801 = vsel %vm254, %v800, 0
    %803 = vmatprep.subr.mxu0 0.0
    %804 = vmatpush1.msra.mxu0 %v246
    %805 = vmatprep.subr.mxu0 0.0
    %806 = vmatpush1.msra.mxu0 %v247
    %807 = vmatprep.subr.mxu0 0.0
    %808 = vmatpush1.msra.mxu0 %v248
    %809 = vmatprep.subr.mxu0 0.0
    %810 = vmatpush1.msra.mxu0 %v249
    %811 = vmatprep.subr.mxu0 0.0
    %812 = vmatpush1.msra.mxu0 0.0
    %813 = vmatprep.subr.mxu0 0.0
    %814 = vmatpush1.msra.mxu0 0.0
    %815 = vmatprep.subr.mxu0 0.0
    %816 = vmatpush1.msra.mxu0 0.0
    %817 = vmatprep.subr.mxu0 0.0
    %818 = vmatpush1.msra.mxu0 0.0
    %819 = vmatprep.subr.mxu0 0.0
    %820 = vmatpush1.msra.mxu0 0.0
    %821 = vmatprep.subr.mxu0 0.0
    %822 = vmatpush1.msra.mxu0 0.0
    %823 = vmatprep.subr.mxu0 0.0
    %824 = vmatpush1.msra.mxu0 0.0
    %825 = vmatprep.subr.mxu0 0.0
    %826 = vmatpush1.msra.mxu0 0.0
    %827 = vmatprep.subr.mxu0 0.0
    %828 = vmatpush1.msra.mxu0 0.0
    %829 = vmatprep.subr.mxu0 0.0
    %830 = vmatpush1.msra.mxu0 0.0
    %831 = vmatprep.subr.mxu0 0.0
    %832 = vmatpush1.msra.mxu0 0.0
    %833 = vmatprep.subr.mxu0 0.0
    %834 = vmatpush1.msra.mxu0 0.0
    %835 = vmatprep.subr.mxu0 0.0
    %836 = vmatpush1.msra.mxu0 0.0
    %837 = vmatprep.subr.mxu0 0.0
    %838 = vmatpush1.msra.mxu0 0.0
    %839 = vmatprep.subr.mxu0 0.0
    %840 = vmatpush1.msra.mxu0 0.0
    %841 = vmatprep.subr.mxu0 0.0
    %842 = vmatpush1.msra.mxu0 0.0
    %843 = vmatprep.subr.mxu0 0.0
    %844 = vmatpush1.msra.mxu0 0.0
    %845 = vmatprep.subr.mxu0 0.0
    %846 = vmatpush1.msra.mxu0 0.0
    %847 = vmatprep.subr.mxu0 0.0
    %848 = vmatpush1.msra.mxu0 0.0
    %849 = vmatprep.subr.mxu0 0.0
    %850 = vmatpush1.msra.mxu0 0.0
    %851 = vmatprep.subr.mxu0 0.0
    %852 = vmatpush1.msra.mxu0 0.0
    %853 = vmatprep.subr.mxu0 0.0
    %854 = vmatpush1.msra.mxu0 0.0
    %855 = vmatprep.subr.mxu0 0.0
    %856 = vmatpush1.msra.mxu0 0.0
    %857 = vmatprep.subr.mxu0 0.0
    %858 = vmatpush1.msra.mxu0 0.0
    %859 = vmatprep.subr.mxu0 0.0
    %860 = vmatpush1.msra.mxu0 0.0
    %861 = vmatprep.subr.mxu0 0.0
    %862 = vmatpush1.msra.mxu0 0.0
    %863 = vmatprep.subr.mxu0 0.0
    %864 = vmatpush1.msra.mxu0 0.0
    %865 = vmatprep.subr.mxu0 0.0
    %866 = vmatpush1.msra.mxu0 0.0
    %867 = vmatprep.mubr.f32.mxu0 0.0
    %868 = vmatmul.mubr.f32.gmra.mrb[0].mxu0 %v801
    %v869 = vpop.f32.mrb[0].mxu0
    %v870 = vadd.f32 %v253, %v869
    %v871 = vpop.f32.mrb[0].mxu0
    %872 = vdwg.mxu0
    %v874 = vrot.slane %v870, 6
    %v876 = vadd.f32 %v243, %v874
    %v877 = vxor.u32 %v876, 2147483648
    %v878 = vmul.f32 %v877, 1.442695
    %v879 = vpow.pop %v878
    %v880 = vadd.f32 %v879, 1.0
    %v881 = vrcp.pop %v880
    %v882 = vmul.f32 1.0, %v881
    %883 = vrot.lane.b32.xlu0 %v874, 64
    %v884 = vpop.permute.xlu0 %883
    %v886 = vmul.f32 %v882, %v884
    %888 = vrot.lane.b32.xlu0 %v886, 64
    %v889 = vpop.permute.xlu0 %888
    %v891 = vadd.f32 %v243, %v889
    %v892 = vtanh.pop %v891
    %v894 = vrot.slane %v892, 2
    %v896 = vsub.f32 %v797, %v894
    %v898 = vrot.slane %v896, 6
    %899 = vrot.lane.b32.xlu0 %v898, 96
    %v900 = vpop.permute.xlu0 %899
    %v902 = vmul.f32 %v882, %v900
    %904 = vrot.lane.b32.xlu0 %v902, 32
    %v905 = vpop.permute.xlu0 %904
    %v907 = vadd.f32 %v892, %v905
    %v909 = vrot.slane %v907, 2
    %910 = vrot.lane.b32.xlu0 %v909, 64
    %v911 = vpop.permute.xlu0 %910
    %v912 = vsel %vm254, %v911, 0
    %914 = vmatprep.subr.mxu0 0.0
    %915 = vmatpush1.msra.mxu0 %v246
    %916 = vmatprep.subr.mxu0 0.0
    %917 = vmatpush1.msra.mxu0 %v247
    %918 = vmatprep.subr.mxu0 0.0
    %919 = vmatpush1.msra.mxu0 %v248
    %920 = vmatprep.subr.mxu0 0.0
    %921 = vmatpush1.msra.mxu0 %v249
    %922 = vmatprep.subr.mxu0 0.0
    %923 = vmatpush1.msra.mxu0 0.0
    %924 = vmatprep.subr.mxu0 0.0
    %925 = vmatpush1.msra.mxu0 0.0
    %926 = vmatprep.subr.mxu0 0.0
    %927 = vmatpush1.msra.mxu0 0.0
    %928 = vmatprep.subr.mxu0 0.0
    %929 = vmatpush1.msra.mxu0 0.0
    %930 = vmatprep.subr.mxu0 0.0
    %931 = vmatpush1.msra.mxu0 0.0
    %932 = vmatprep.subr.mxu0 0.0
    %933 = vmatpush1.msra.mxu0 0.0
    %934 = vmatprep.subr.mxu0 0.0
    %935 = vmatpush1.msra.mxu0 0.0
    %936 = vmatprep.subr.mxu0 0.0
    %937 = vmatpush1.msra.mxu0 0.0
    %938 = vmatprep.subr.mxu0 0.0
    %939 = vmatpush1.msra.mxu0 0.0
    %940 = vmatprep.subr.mxu0 0.0
    %941 = vmatpush1.msra.mxu0 0.0
    %942 = vmatprep.subr.mxu0 0.0
    %943 = vmatpush1.msra.mxu0 0.0
    %944 = vmatprep.subr.mxu0 0.0
    %945 = vmatpush1.msra.mxu0 0.0
    %946 = vmatprep.subr.mxu0 0.0
    %947 = vmatpush1.msra.mxu0 0.0
    %948 = vmatprep.subr.mxu0 0.0
    %949 = vmatpush1.msra.mxu0 0.0
    %950 = vmatprep.subr.mxu0 0.0
    %951 = vmatpush1.msra.mxu0 0.0
    %952 = vmatprep.subr.mxu0 0.0
    %953 = vmatpush1.msra.mxu0 0.0
    %954 = vmatprep.subr.mxu0 0.0
    %955 = vmatpush1.msra.mxu0 0.0
    %956 = vmatprep.subr.mxu0 0.0
    %957 = vmatpush1.msra.mxu0 0.0
    %958 = vmatprep.subr.mxu0 0.0
    %959 = vmatpush1.msra.mxu0 0.0
    %960 = vmatprep.subr.mxu0 0.0
    %961 = vmatpush1.msra.mxu0 0.0
    %962 = vmatprep.subr.mxu0 0.0
    %963 = vmatpush1.msra.mxu0 0.0
    %964 = vmatprep.subr.mxu0 0.0
    %965 = vmatpush1.msra.mxu0 0.0
    %966 = vmatprep.subr.mxu0 0.0
    %967 = vmatpush1.msra.mxu0 0.0
    %968 = vmatprep.subr.mxu0 0.0
    %969 = vmatpush1.msra.mxu0 0.0
    %970 = vmatprep.subr.mxu0 0.0
    %971 = vmatpush1.msra.mxu0 0.0
    %972 = vmatprep.subr.mxu0 0.0
    %973 = vmatpush1.msra.mxu0 0.0
    %974 = vmatprep.subr.mxu0 0.0
    %975 = vmatpush1.msra.mxu0 0.0
    %976 = vmatprep.subr.mxu0 0.0
    %977 = vmatpush1.msra.mxu0 0.0
    %978 = vmatprep.mubr.f32.mxu0 0.0
    %979 = vmatmul.mubr.f32.gmra.mrb[0].mxu0 %v912
    %v980 = vpop.f32.mrb[0].mxu0
    %v981 = vadd.f32 %v253, %v980
    %v982 = vpop.f32.mrb[0].mxu0
    %983 = vdwg.mxu0
    %v985 = vrot.slane %v981, 4
    %v987 = vadd.f32 %v243, %v985
    %v988 = vxor.u32 %v987, 2147483648
    %v989 = vmul.f32 %v988, 1.442695
    %v990 = vpow.pop %v989
    %v991 = vadd.f32 %v990, 1.0
    %v992 = vrcp.pop %v991
    %v993 = vmul.f32 1.0, %v992
    %994 = vrot.lane.b32.xlu0 %v985, 64
    %v995 = vpop.permute.xlu0 %994
    %v997 = vmul.f32 %v993, %v995
    %999 = vrot.lane.b32.xlu0 %v997, 64
    %v1000 = vpop.permute.xlu0 %999
    %v1002 = vadd.f32 %v243, %v1000
    %v1003 = vtanh.pop %v1002
    %v1005 = vrot.slane %v1003, 2
    %v1007 = vsub.f32 %v907, %v1005
    %v1009 = vrot.slane %v1007, 6
    %1010 = vrot.lane.b32.xlu0 %v1009, 96
    %v1011 = vpop.permute.xlu0 %1010
    %v1013 = vmul.f32 %v993, %v1011
    %1015 = vrot.lane.b32.xlu0 %v1013, 32
    %v1016 = vpop.permute.xlu0 %1015
    %v1018 = vadd.f32 %v1003, %v1016
    %v1020 = vrot.slane %v1018, 4
    %1021 = vrot.lane.b32.xlu0 %v1020, 64
    %v1022 = vpop.permute.xlu0 %1021
    %v1023 = vsel %vm254, %v1022, 0
    %1025 = vmatprep.subr.mxu0 0.0
    %1026 = vmatpush1.msra.mxu0 %v246
    %1027 = vmatprep.subr.mxu0 0.0
    %1028 = vmatpush1.msra.mxu0 %v247
    %1029 = vmatprep.subr.mxu0 0.0
    %1030 = vmatpush1.msra.mxu0 %v248
    %1031 = vmatprep.subr.mxu0 0.0
    %1032 = vmatpush1.msra.mxu0 %v249
    %1033 = vmatprep.subr.mxu0 0.0
    %1034 = vmatpush1.msra.mxu0 0.0
    %1035 = vmatprep.subr.mxu0 0.0
    %1036 = vmatpush1.msra.mxu0 0.0
    %1037 = vmatprep.subr.mxu0 0.0
    %1038 = vmatpush1.msra.mxu0 0.0
    %1039 = vmatprep.subr.mxu0 0.0
    %1040 = vmatpush1.msra.mxu0 0.0
    %1041 = vmatprep.subr.mxu0 0.0
    %1042 = vmatpush1.msra.mxu0 0.0
    %1043 = vmatprep.subr.mxu0 0.0
    %1044 = vmatpush1.msra.mxu0 0.0
    %1045 = vmatprep.subr.mxu0 0.0
    %1046 = vmatpush1.msra.mxu0 0.0
    %1047 = vmatprep.subr.mxu0 0.0
    %1048 = vmatpush1.msra.mxu0 0.0
    %1049 = vmatprep.subr.mxu0 0.0
    %1050 = vmatpush1.msra.mxu0 0.0
    %1051 = vmatprep.subr.mxu0 0.0
    %1052 = vmatpush1.msra.mxu0 0.0
    %1053 = vmatprep.subr.mxu0 0.0
    %1054 = vmatpush1.msra.mxu0 0.0
    %1055 = vmatprep.subr.mxu0 0.0
    %1056 = vmatpush1.msra.mxu0 0.0
    %1057 = vmatprep.subr.mxu0 0.0
    %1058 = vmatpush1.msra.mxu0 0.0
    %1059 = vmatprep.subr.mxu0 0.0
    %1060 = vmatpush1.msra.mxu0 0.0
    %1061 = vmatprep.subr.mxu0 0.0
    %1062 = vmatpush1.msra.mxu0 0.0
    %1063 = vmatprep.subr.mxu0 0.0
    %1064 = vmatpush1.msra.mxu0 0.0
    %1065 = vmatprep.subr.mxu0 0.0
    %1066 = vmatpush1.msra.mxu0 0.0
    %1067 = vmatprep.subr.mxu0 0.0
    %1068 = vmatpush1.msra.mxu0 0.0
    %1069 = vmatprep.subr.mxu0 0.0
    %1070 = vmatpush1.msra.mxu0 0.0
    %1071 = vmatprep.subr.mxu0 0.0
    %1072 = vmatpush1.msra.mxu0 0.0
    %1073 = vmatprep.subr.mxu0 0.0
    %1074 = vmatpush1.msra.mxu0 0.0
    %1075 = vmatprep.subr.mxu0 0.0
    %1076 = vmatpush1.msra.mxu0 0.0
    %1077 = vmatprep.subr.mxu0 0.0
    %1078 = vmatpush1.msra.mxu0 0.0
    %1079 = vmatprep.subr.mxu0 0.0
    %1080 = vmatpush1.msra.mxu0 0.0
    %1081 = vmatprep.subr.mxu0 0.0
    %1082 = vmatpush1.msra.mxu0 0.0
    %1083 = vmatprep.subr.mxu0 0.0
    %1084 = vmatpush1.msra.mxu0 0.0
    %1085 = vmatprep.subr.mxu0 0.0
    %1086 = vmatpush1.msra.mxu0 0.0
    %1087 = vmatprep.subr.mxu0 0.0
    %1088 = vmatpush1.msra.mxu0 0.0
    %1089 = vmatprep.mubr.f32.mxu0 0.0
    %1090 = vmatmul.mubr.f32.gmra.mrb[0].mxu0 %v1023
    %v1091 = vpop.f32.mrb[0].mxu0
    %v1092 = vadd.f32 %v253, %v1091
    %v1093 = vpop.f32.mrb[0].mxu0
    %1094 = vdwg.mxu0
    %v1096 = vrot.slane %v1092, 2
    %v1098 = vadd.f32 %v243, %v1096
    %v1099 = vxor.u32 %v1098, 2147483648
    %v1100 = vmul.f32 %v1099, 1.442695
    %v1101 = vpow.pop %v1100
    %v1102 = vadd.f32 %v1101, 1.0
    %v1103 = vrcp.pop %v1102
    %v1104 = vmul.f32 1.0, %v1103
    %1105 = vrot.lane.b32.xlu0 %v1096, 64
    %v1106 = vpop.permute.xlu0 %1105
    %v1108 = vmul.f32 %v1104, %v1106
    %1110 = vrot.lane.b32.xlu0 %v1108, 64
    %v1111 = vpop.permute.xlu0 %1110
    %v1113 = vadd.f32 %v243, %v1111
    %v1114 = vtanh.pop %v1113
    %v1116 = vrot.slane %v1114, 2
    %v1118 = vsub.f32 %v1018, %v1116
    %v1120 = vrot.slane %v1118, 6
    %1121 = vrot.lane.b32.xlu0 %v1120, 96
    %v1122 = vpop.permute.xlu0 %1121
    %v1124 = vmul.f32 %v1104, %v1122
    %1126 = vrot.lane.b32.xlu0 %v1124, 32
    %v1127 = vpop.permute.xlu0 %1126
    %v1129 = vadd.f32 %v1114, %v1127
    %v1130 = vld [vmem:[%s4] sm:$0xff]
    %v1131 = vld [vmem:[%s4 + $0x8] sm:$0xff]
    %v1132 = vld [vmem:[%s4 + $0x10] sm:$0xff]
    %v1133 = vld [vmem:[%s4 + $0x18] sm:$0xff]
    %v1134 = vlaneseq
    %v1135 = vshrl.u32 %v1134, 7
    %v1136 = vsub.s32 0, %v1135
    %v1137 = vrot.slane %v55, %v1136
    %v1139 = vrot.slane %v1129, 6
    %1140 = vrot.lane.b32.xlu0 %v1139, 64
    %v1141 = vpop.permute.xlu0 %1140
    %v1142 = vsel %vm254, %v1141, 0
    %1144 = vmatprep.subr.mxu0 0.0
    %1145 = vmatpush1.msra.mxu0 %v1130
    %1146 = vmatprep.subr.mxu0 0.0
    %1147 = vmatpush1.msra.mxu0 %v1131
    %1148 = vmatprep.subr.mxu0 0.0
    %1149 = vmatpush1.msra.mxu0 %v1132
    %1150 = vmatprep.subr.mxu0 0.0
    %1151 = vmatpush1.msra.mxu0 %v1133
    %1152 = vmatprep.subr.mxu0 0.0
    %1153 = vmatpush1.msra.mxu0 0.0
    %1154 = vmatprep.subr.mxu0 0.0
    %1155 = vmatpush1.msra.mxu0 0.0
    %1156 = vmatprep.subr.mxu0 0.0
    %1157 = vmatpush1.msra.mxu0 0.0
    %1158 = vmatprep.subr.mxu0 0.0
    %1159 = vmatpush1.msra.mxu0 0.0
    %1160 = vmatprep.subr.mxu0 0.0
    %1161 = vmatpush1.msra.mxu0 0.0
    %1162 = vmatprep.subr.mxu0 0.0
    %1163 = vmatpush1.msra.mxu0 0.0
    %1164 = vmatprep.subr.mxu0 0.0
    %1165 = vmatpush1.msra.mxu0 0.0
    %1166 = vmatprep.subr.mxu0 0.0
    %1167 = vmatpush1.msra.mxu0 0.0
    %1168 = vmatprep.subr.mxu0 0.0
    %1169 = vmatpush1.msra.mxu0 0.0
    %1170 = vmatprep.subr.mxu0 0.0
    %1171 = vmatpush1.msra.mxu0 0.0
    %1172 = vmatprep.subr.mxu0 0.0
    %1173 = vmatpush1.msra.mxu0 0.0
    %1174 = vmatprep.subr.mxu0 0.0
    %1175 = vmatpush1.msra.mxu0 0.0
    %1176 = vmatprep.subr.mxu0 0.0
    %1177 = vmatpush1.msra.mxu0 0.0
    %1178 = vmatprep.subr.mxu0 0.0
    %1179 = vmatpush1.msra.mxu0 0.0
    %1180 = vmatprep.subr.mxu0 0.0
    %1181 = vmatpush1.msra.mxu0 0.0
    %1182 = vmatprep.subr.mxu0 0.0
    %1183 = vmatpush1.msra.mxu0 0.0
    %1184 = vmatprep.subr.mxu0 0.0
    %1185 = vmatpush1.msra.mxu0 0.0
    %1186 = vmatprep.subr.mxu0 0.0
    %1187 = vmatpush1.msra.mxu0 0.0
    %1188 = vmatprep.subr.mxu0 0.0
    %1189 = vmatpush1.msra.mxu0 0.0
    %1190 = vmatprep.subr.mxu0 0.0
    %1191 = vmatpush1.msra.mxu0 0.0
    %1192 = vmatprep.subr.mxu0 0.0
    %1193 = vmatpush1.msra.mxu0 0.0
    %1194 = vmatprep.subr.mxu0 0.0
    %1195 = vmatpush1.msra.mxu0 0.0
    %1196 = vmatprep.subr.mxu0 0.0
    %1197 = vmatpush1.msra.mxu0 0.0
    %1198 = vmatprep.subr.mxu0 0.0
    %1199 = vmatpush1.msra.mxu0 0.0
    %1200 = vmatprep.subr.mxu0 0.0
    %1201 = vmatpush1.msra.mxu0 0.0
    %1202 = vmatprep.subr.mxu0 0.0
    %1203 = vmatpush1.msra.mxu0 0.0
    %1204 = vmatprep.subr.mxu0 0.0
    %1205 = vmatpush1.msra.mxu0 0.0
    %1206 = vmatprep.subr.mxu0 0.0
    %1207 = vmatpush1.msra.mxu0 0.0
    %1208 = vmatprep.mubr.f32.mxu0 0.0
    %1209 = vmatmul.mubr.f32.gmra.mrb[0].mxu0 %v1142
    %v1210 = vpop.f32.mrb[0].mxu0
    %v1211 = vadd.f32 %v1137, %v1210
    %v1212 = vpop.f32.mrb[0].mxu0
    %1213 = vdwg.mxu0
    %vm1214 = vcmask 41984
    %1215 = vst.msk [vmem:[#allocation7] sm:$0x3] %vm1214, %v1211
    // Predicated region
    $region34: #{tpu_custom_call.1} parent=1 // pred_check
      _
    $region35: #{tpu_custom_call.1} parent=1 // pred_check_branch
      %1217 = sbr.rel (0) target = $region37
    $region36: #{tpu_custom_call.1} parent=1 // pred_region
      %s1219 = ssub.s32 32, 32
      %1220 = vsyncadd [#allocation4], %s1219
      %s1222 = sshll.u32 [#allocation7], 4
      %s1223 = int_to_ptr.vmem [resolvable:$true] %s1222
      %1225 = dma.vmem_to_hbm [thread:$0]  %s1223, 32, %s6, [#allocation4]
    $region37: #{tpu_custom_call.1} parent=1 // pred_fallthru
      _
    // Predicated region
    $region38: #{tpu_custom_call.1} parent=1 // pred_check
      _
    $region39: #{tpu_custom_call.1} parent=1 // pred_check_branch
      %1227 = sbr.rel (0) target = $region41
    $region40: #{tpu_custom_call.1} parent=1 // pred_region
      %1228 = dma.done [#allocation4], 32
    $region41: #{tpu_custom_call.1} parent=1 // pred_fallthru
      _
    %1229 = vsyncpa [#allocation3], 1
    %1230 = vsyncpa [#allocation6], 1
    %1231 = vsyncpa [#allocation4], 1

</llo_original>
